<compile_context>
chip_gen: v6e
topology: v6e:2x2x1
jax: 0.10.0
libtpu: 0.0.40
codegen_flags: <defaults>
</compile_context>

<pallas_src>
import functools

import jax
import jax.numpy as jnp
import numpy as np
from jax.experimental import pallas as pl
from jax.experimental.pallas import tpu as pltpu

SELU_ALPHA = 1.6732632423543772
SELU_SCALE = 1.0507009873554805


def _selu(x):
    # scale * (max(0,x) + min(0, alpha*(exp(x)-1)))
    return SELU_SCALE * jnp.where(
        x > 0, x, SELU_ALPHA * (jnp.exp(jnp.minimum(x, 0.0)) - 1.0)
    )


def _mpnn_kernel(
    node_ref, edge_ref, adj_ref,
    w_enc_ref, w_x_ref, w_m2_ih_ref, w_r1_ref, w_r2_ref, w_out_ref,
    bias_f_ref, bias_g_ref, b_out_ref,
    out_ref,
    *, diameter, bb, n, f,
):
    rows = bb * n

    # ---- weights / biases loaded once (hoisted out of all loops) ----
    w_enc = w_enc_ref[...]            # (F, F)
    w_x = w_x_ref[...]                # (F, 5F) = [m1_src | m1_tgt | hh_r | hh_z | hh_n]
    w_m2_ih = w_m2_ih_ref[...]        # (F, 3F) = w_m2 @ w_ih (msg layer-2 folded into GRU)
    w_r1 = w_r1_ref[...]              # (F, F)
    w_r2 = w_r2_ref[...]              # (F, F)
    w_out = w_out_ref[...]            # (F, out_dim)

    bf = bias_f_ref[...]              # (5, F): [b_enc, w_m1_edge, b_m1, b_r1, b_r2]
    b_enc, w_m1e, b_m1 = bf[0:1], bf[1:2], bf[2:3]
    b_r1, b_r2 = bf[3:4], bf[4:5]
    bg = bias_g_ref[...]              # (3, 3F): [b_ih, b_hh, b_m2 @ w_ih]
    b_ih, b_hh, b_m2_ih = bg[0:1], bg[1:2], bg[2:3]
    b_out = b_out_ref[...]            # (1, out_dim)

    x = node_ref[...].reshape(rows, f)            # (rows, F)
    e = edge_ref[...]                             # (bb, Ns, Nt)
    adj = adj_ref[...]                            # (bb, Ns, Nt)

    # ---- loop-invariant, lane-packed message pieces (hoisted) ----
    # pre[b, s, t*F + j]: (target, feature) folded into the lane axis so the
    # big elementwise slabs use 128 dense lanes (N=8, F=16).
    e_chunks = []
    m_chunks = []
    for t in range(n):
        e_chunks.append(e[:, :, t:t + 1] * w_m1e + b_m1)                 # (bb, Ns, F)
        m_chunks.append(jnp.broadcast_to(adj[:, :, t:t + 1], (bb, n, f)))
    e_contrib = jnp.concatenate(e_chunks, axis=-1)     # (bb, Ns, Nt*F)
    adj_exp = jnp.concatenate(m_chunks, axis=-1)       # (bb, Ns, Nt*F)

    # per-target degree, shaped (rows, 1) -- also loop-invariant
    deg_bn = jnp.sum(adj, axis=1)                      # (bb, Nt)
    deg_rows = jnp.concatenate(
        [deg_bn[:, t:t + 1][:, :, None] for t in range(n)], axis=1
    ).reshape(rows, 1)                                 # (rows, 1)

    # ---- input encoder ----
    x = jnp.dot(x, w_enc, preferred_element_type=jnp.float32) + b_enc

    for _ in range(diameter):
        # one fused (F, 5F) projection: message src/tgt roles + GRU hidden proj
        xc = jnp.dot(x, w_x, preferred_element_type=jnp.float32)        # (rows, 5F)
        a_src = xc[:, :f].reshape(bb, n, f)                             # (bb, Ns, F)
        a_tgt = xc[:, f:2 * f].reshape(bb, n, f)                        # (bb, Nt, F)
        gh = xc[:, 2 * f:] + b_hh                                       # (rows, 3F)

        # lane-packed message tensor: pre[b, s, t*F + j]
        a_src_rep = jnp.concatenate([a_src] * n, axis=-1)               # (bb, Ns, Nt*F)
        a_tgt_flat = jnp.concatenate(
            [a_tgt[:, t:t + 1, :] for t in range(n)], axis=-1)          # (bb, 1, Nt*F)
        msg = _selu(a_src_rep + a_tgt_flat + e_contrib)                 # (bb, Ns, Nt*F)
        agg_flat = jnp.sum(adj_exp * msg, axis=1)                       # (bb, Nt*F)
        agg_h = jnp.concatenate(
            [agg_flat[:, t * f:(t + 1) * f][:, None, :] for t in range(n)],
            axis=1).reshape(rows, f)                                    # (rows, F)

        # ---- GRUCell (message layer-2 folded into the input projection) ----
        gi = (jnp.dot(agg_h, w_m2_ih, preferred_element_type=jnp.float32)
              + deg_rows * b_m2_ih + b_ih)                              # (rows, 3F)
        r = jax.nn.sigmoid(gi[:, :f] + gh[:, :f])
        z = jax.nn.sigmoid(gi[:, f:2 * f] + gh[:, f:2 * f])
        ng = jnp.tanh(gi[:, 2 * f:] + r * gh[:, 2 * f:])
        x = (1.0 - z) * ng + z * x

    # ---- readout ----
    pooled = jnp.sum(x.reshape(bb, n, f), axis=1)                       # (bb, F)
    h = _selu(jnp.dot(pooled, w_r1, preferred_element_type=jnp.float32) + b_r1)
    h = _selu(jnp.dot(h, w_r2, preferred_element_type=jnp.float32) + b_r2)
    logits = jnp.dot(h, w_out, preferred_element_type=jnp.float32) + b_out
    out_ref[...] = logits.reshape(1, bb, logits.shape[-1])


def _tpu_info():
    """Best-effort (vmem_bytes, num_tensorcores) for the current TPU."""
    vmem_bytes = 128 << 20
    num_tc = 1
    kind = ""
    try:
        kind = jax.devices()[0].device_kind.lower()
    except Exception:
        pass
    try:
        vmem_bytes = int(getattr(pltpu.get_tpu_info(), "vmem_capacity_bytes",
                                 vmem_bytes))
    except Exception:
        pass
    if "v7" in kind:
        num_tc = 2                       # megacore: keep >=2 grid steps
        vmem_bytes = min(vmem_bytes, 64 << 20)
    return vmem_bytes, num_tc


def _step_vmem_bytes(bb, n, f, out_dim):
    # double-buffered I/O blocks + lane-packed in-kernel slabs (f32)
    io = 2 * bb * (n * f + 2 * n * n + out_dim) * 4
    slabs = 6 * bb * n * n * f * 4       # e_contrib, adj_exp, msg, masked, headroom
    acts = 4 * bb * n * (5 * f + 3 * f) * 4
    return io + slabs + acts


def _pick_batch_block(batch, n, f, out_dim):
    """VMEM-aware block: target ~512 rows per grid step; on multi-TC chips keep
    >=2 grid steps so both TensorCores get work."""
    vmem_bytes, num_tc = _tpu_info()
    vmem_limit = int(min((vmem_bytes * 3) // 4, 96 << 20))  # ~48 MiB v7x / 96 MiB v5e,v6e
    target_rows = 512
    bb = max(1, min(batch, pl.cdiv(target_rows, max(n, 1))))
    while bb > 1 and _step_vmem_bytes(bb, n, f, out_dim) > vmem_limit // 2:
        bb -= 1
    if num_tc >= 2:
        while bb > 1 and pl.cdiv(batch, bb) < num_tc:
            bb = max(1, bb // 2)
    return bb, vmem_limit


def init_params(key, feat_dim, action_dim):
    F = feat_dim
    keys = jax.random.split(key, 18)

    def mat(k, shape):
        return jax.random.normal(k, shape, jnp.float32) * 0.2

    p = {}
    p["w_enc"] = mat(keys[0], (F, F))
    p["b_enc"] = mat(keys[1], (1, F))
    wm1 = mat(keys[2], (2 * F + 1, F))                  # transposed Linear(2F+1 -> F)
    p["w_m1_node"] = jnp.concatenate([wm1[:F], wm1[F:2 * F]], axis=1)   # (F, 2F)
    p["w_m1_edge"] = wm1[2 * F:2 * F + 1]               # (1, F)
    p["b_m1"] = mat(keys[3], (1, F))
    p["w_m2"] = mat(keys[4], (F, F))
    p["b_m2"] = mat(keys[5], (1, F))
    p["w_ih"] = mat(keys[6], (F, 3 * F))                # transposed GRU weight_ih [r|z|n]
    p["w_hh"] = mat(keys[7], (F, 3 * F))                # transposed GRU weight_hh
    p["b_ih"] = mat(keys[8], (1, 3 * F))
    p["b_hh"] = mat(keys[9], (1, 3 * F))
    p["w_r1"] = mat(keys[10], (F, F))
    p["b_r1"] = mat(keys[11], (1, F))
    p["w_r2"] = mat(keys[12], (F, F))
    p["b_r2"] = mat(keys[13], (1, F))
    p["w_pol"] = mat(keys[14], (F, action_dim))
    p["b_pol"] = mat(keys[15], (1, action_dim))
    p["w_val"] = mat(keys[16], (F, 1))
    p["b_val"] = mat(keys[17], (1, 1))
    return p


def mpnn_forward(params, node_features, edge_features, adjacency, *,
                 nn_type="policy", diameter=3, batch_block=None):
    B, N, F = node_features.shape
    if nn_type == "policy":
        w_out, b_out = params["w_pol"], params["b_pol"]
    else:
        w_out, b_out = params["w_val"], params["b_val"]
    out_dim = w_out.shape[1]

    nonempty = jnp.any(adjacency != 0)

    bb_auto, vmem_limit = _pick_batch_block(B, N, F, out_dim)
    bb = bb_auto if batch_block is None else batch_block
    num_steps = pl.cdiv(B, bb)
    b_pad = num_steps * bb
    if b_pad != B:
        pad = ((0, b_pad - B), (0, 0), (0, 0))
        node_features = jnp.pad(node_features, pad)
        edge_features = jnp.pad(edge_features, pad)
        adjacency = jnp.pad(adjacency, pad)

    # ---- host-side weight fusion ----
    # (a) message src/tgt projection fused with the GRU hidden projection
    w_x = jnp.concatenate([params["w_m1_node"], params["w_hh"]], axis=1)    # (F, 5F)
    # (b) message layer-2 (linear) folded into the GRU input projection
    w_m2_ih = params["w_m2"] @ params["w_ih"]                               # (F, 3F)
    b_m2_ih = params["b_m2"] @ params["w_ih"]                               # (1, 3F)
    bias_f = jnp.concatenate(
        [params["b_enc"], params["w_m1_edge"], params["b_m1"],
         params["b_r1"], params["b_r2"]], axis=0)                           # (5, F)
    bias_g = jnp.concatenate(
        [params["b_ih"], params["b_hh"], b_m2_ih], axis=0)                  # (3, 3F)

    # TODO(synk): matmul operands kept f32 (not bf16): the K=16 matmuls are not
    # the bottleneck and bf16 would exceed the 1e-3 validation tolerance.
    weights = [params["w_enc"], w_x, w_m2_ih, params["w_r1"], params["w_r2"],
               w_out, bias_f, bias_g, b_out]

    def full_spec(arr):
        nd = arr.ndim
        return pl.BlockSpec(arr.shape, lambda b, _nd=nd: (0,) * _nd)

    in_specs = [
        pl.BlockSpec((bb, N, F), lambda b: (b, 0, 0)),
        pl.BlockSpec((bb, N, N), lambda b: (b, 0, 0)),
        pl.BlockSpec((bb, N, N), lambda b: (b, 0, 0)),
    ] + [full_spec(w) for w in weights]

    kernel = functools.partial(_mpnn_kernel, diameter=diameter, bb=bb, n=N, f=F)

    out = pl.pallas_call(
        kernel,
        out_shape=jax.ShapeDtypeStruct((num_steps, bb, out_dim), jnp.float32),
        grid_spec=pltpu.PrefetchScalarGridSpec(
            num_scalar_prefetch=0,
            grid=(num_steps,),
            in_specs=in_specs,
            out_specs=pl.BlockSpec((1, bb, out_dim), lambda b: (b, 0, 0)),
        ),
        compiler_params=pltpu.CompilerParams(
            dimension_semantics=("parallel",),
            vmem_limit_bytes=vmem_limit),
    )(node_features, edge_features, adjacency, *weights)

    out = out.reshape(b_pad, out_dim)[:B]

    # Empty-graph branch of the torch module, expressed trace-friendly.
    # TODO(synk): torch returns shape (B,) for the *value* head only in the empty
    # branch; data-dependent output rank is not expressible under tracing, so we
    # always return (B, out_dim).
    return jnp.where(nonempty, out, jnp.zeros_like(out))


def mpnn_reference(params, node, edge, adj, *, nn_type="policy", diameter=3):
    """Pure-JAX dense reference with identical semantics (for validation)."""
    F = node.shape[-1]
    x = node @ params["w_enc"] + params["b_enc"]
    mask = adj != 0
    w_src = params["w_m1_node"][:, :F]
    w_tgt = params["w_m1_node"][:, F:]
    for _ in range(diameter):
        a_src = x @ w_src
        a_tgt = x @ w_tgt
        pre = (a_src[:, :, None, :] + a_tgt[:, None, :, :]
               + edge[:, :, :, None] * params["w_m1_edge"][0]
               + params["b_m1"][0])                                   # (B, Ns, Nt, F)
        m = _selu(pre) @ params["w_m2"] + params["b_m2"][0]
        m = jnp.where(mask[:, :, :, None], m, 0.0)
        agg = m.sum(axis=1)                                           # (B, Nt, F)
        gi = agg @ params["w_ih"] + params["b_ih"][0]
        gh = x @ params["w_hh"] + params["b_hh"][0]
        r = jax.nn.sigmoid(gi[..., :F] + gh[..., :F])
        z = jax.nn.sigmoid(gi[..., F:2 * F] + gh[..., F:2 * F])
        n = jnp.tanh(gi[..., 2 * F:] + r * gh[..., 2 * F:])
        x = (1.0 - z) * n + z * x
    pooled = x.sum(axis=1)
    h = _selu(pooled @ params["w_r1"] + params["b_r1"])
    h = _selu(h @ params["w_r2"] + params["b_r2"])
    if nn_type == "policy":
        out = h @ params["w_pol"] + params["b_pol"]
    else:
        out = h @ params["w_val"] + params["b_val"]
    return jnp.where(jnp.any(adj != 0), out, jnp.zeros_like(out))


if __name__ == "__main__":
    B, N, F, A = 2, 8, 16, 4
    diameter = 3

    key = jax.random.PRNGKey(0)
    kp, kn, ke, ka = jax.random.split(key, 4)
    params = init_params(kp, F, A)

    node = jax.random.normal(kn, (B, N, F), jnp.float32)
    edge = jax.random.normal(ke, (B, N, N), jnp.float32)
    # same adjacency pattern per batch (required by the torch module's reshape logic)
    adj_single = (jax.random.uniform(ka, (N, N)) < 0.4).astype(jnp.float32)
    adj = jnp.tile(adj_single[None], (B, 1, 1))

    fwd_policy = jax.jit(functools.partial(mpnn_forward, nn_type="policy",
                                           diameter=diameter))
    fwd_value = jax.jit(functools.partial(mpnn_forward, nn_type="value",
                                          diameter=diameter))

    out_p = jax.block_until_ready(fwd_policy(params, node, edge, adj))
    out_v = jax.block_until_ready(fwd_value(params, node, edge, adj))
    assert out_p.shape == (B, A)
    assert out_v.shape == (B, 1)

    ref_p = mpnn_reference(params, node, edge, adj, nn_type="policy", diameter=diameter)
    ref_v = mpnn_reference(params, node, edge, adj, nn_type="value", diameter=diameter)
    np.testing.assert_allclose(np.asarray(out_p), np.asarray(ref_p), rtol=1e-3, atol=1e-3)
    np.testing.assert_allclose(np.asarray(out_v), np.asarray(ref_v), rtol=1e-3, atol=1e-3)

    # empty-graph semantics (torch `is_empty` branch): all-zero output
    out_empty = jax.block_until_ready(fwd_policy(params, node, edge, jnp.zeros_like(adj)))
    np.testing.assert_allclose(np.asarray(out_empty), 0.0, atol=0.0)

    print("KERNEL_OK")
</pallas_src>

<mosaic_0001>
module attributes {stable_mosaic.version = 11 : i64} {
  func.func @_mpnn_kernel(%arg0: i32, %arg1: memref<2x8x16xf32, #tpu.memory_space<vmem>>, %arg2: memref<2x8x8xf32, #tpu.memory_space<vmem>>, %arg3: memref<2x8x8xf32, #tpu.memory_space<vmem>>, %arg4: memref<16x16xf32, #tpu.memory_space<vmem>>, %arg5: memref<16x80xf32, #tpu.memory_space<vmem>>, %arg6: memref<16x48xf32, #tpu.memory_space<vmem>>, %arg7: memref<16x16xf32, #tpu.memory_space<vmem>>, %arg8: memref<16x16xf32, #tpu.memory_space<vmem>>, %arg9: memref<16x4xf32, #tpu.memory_space<vmem>>, %arg10: memref<5x16xf32, #tpu.memory_space<vmem>>, %arg11: memref<3x48xf32, #tpu.memory_space<vmem>>, %arg12: memref<1x4xf32, #tpu.memory_space<vmem>>, %arg13: memref<1x2x4xf32, #tpu.memory_space<vmem>>) attributes {dimension_semantics = [#tpu.dimension_semantics<parallel>], iteration_bounds = array<i64: 1>, scalar_prefetch = 0 : i64, scratch_operands = 0 : i64, tpu.core_type = #tpu.core_type<tc>, window_params = [{transform_indices = @transform_0, window_bounds = array<i64: 2, 8, 16>}, {transform_indices = @transform_1, window_bounds = array<i64: 2, 8, 8>}, {transform_indices = @transform_2, window_bounds = array<i64: 2, 8, 8>}, {pipeline_mode = #tpu.pipeline_mode<synchronous>, transform_indices = @transform_3, window_bounds = array<i64: 16, 16>}, {pipeline_mode = #tpu.pipeline_mode<synchronous>, transform_indices = @transform_4, window_bounds = array<i64: 16, 80>}, {pipeline_mode = #tpu.pipeline_mode<synchronous>, transform_indices = @transform_5, window_bounds = array<i64: 16, 48>}, {pipeline_mode = #tpu.pipeline_mode<synchronous>, transform_indices = @transform_6, window_bounds = array<i64: 16, 16>}, {pipeline_mode = #tpu.pipeline_mode<synchronous>, transform_indices = @transform_7, window_bounds = array<i64: 16, 16>}, {pipeline_mode = #tpu.pipeline_mode<synchronous>, transform_indices = @transform_8, window_bounds = array<i64: 16, 4>}, {pipeline_mode = #tpu.pipeline_mode<synchronous>, transform_indices = @transform_9, window_bounds = array<i64: 5, 16>}, {pipeline_mode = #tpu.pipeline_mode<synchronous>, transform_indices = @transform_10, window_bounds = array<i64: 3, 48>}, {pipeline_mode = #tpu.pipeline_mode<synchronous>, transform_indices = @transform_11, window_bounds = array<i64: 1, 4>}, {transform_indices = @transform_12, window_bounds = array<i64: 1, 2, 4>}]} {
    %c0 = arith.constant 0 : index
    %c0_0 = arith.constant 0 : index
    %0 = vector.load %arg4[%c0, %c0_0] : memref<16x16xf32, #tpu.memory_space<vmem>>, vector<16x16xf32>
    %c0_1 = arith.constant 0 : index
    %c0_2 = arith.constant 0 : index
    %1 = vector.load %arg5[%c0_1, %c0_2] : memref<16x80xf32, #tpu.memory_space<vmem>>, vector<16x80xf32>
    %c0_3 = arith.constant 0 : index
    %c0_4 = arith.constant 0 : index
    %2 = vector.load %arg6[%c0_3, %c0_4] : memref<16x48xf32, #tpu.memory_space<vmem>>, vector<16x48xf32>
    %c0_5 = arith.constant 0 : index
    %c0_6 = arith.constant 0 : index
    %3 = vector.load %arg7[%c0_5, %c0_6] : memref<16x16xf32, #tpu.memory_space<vmem>>, vector<16x16xf32>
    %c0_7 = arith.constant 0 : index
    %c0_8 = arith.constant 0 : index
    %4 = vector.load %arg8[%c0_7, %c0_8] : memref<16x16xf32, #tpu.memory_space<vmem>>, vector<16x16xf32>
    %c0_9 = arith.constant 0 : index
    %c0_10 = arith.constant 0 : index
    %5 = vector.load %arg9[%c0_9, %c0_10] : memref<16x4xf32, #tpu.memory_space<vmem>>, vector<16x4xf32>
    %c0_11 = arith.constant 0 : index
    %c0_12 = arith.constant 0 : index
    %6 = vector.load %arg10[%c0_11, %c0_12] : memref<5x16xf32, #tpu.memory_space<vmem>>, vector<5x16xf32>
    %7 = vector.extract_strided_slice %6 {offsets = [0, 0], sizes = [1, 16], strides = [1, 1]} : vector<5x16xf32> to vector<1x16xf32>
    %8 = vector.extract_strided_slice %6 {offsets = [1, 0], sizes = [1, 16], strides = [1, 1]} : vector<5x16xf32> to vector<1x16xf32>
    %9 = vector.extract_strided_slice %6 {offsets = [2, 0], sizes = [1, 16], strides = [1, 1]} : vector<5x16xf32> to vector<1x16xf32>
    %10 = vector.extract_strided_slice %6 {offsets = [3, 0], sizes = [1, 16], strides = [1, 1]} : vector<5x16xf32> to vector<1x16xf32>
    %11 = vector.extract_strided_slice %6 {offsets = [4, 0], sizes = [1, 16], strides = [1, 1]} : vector<5x16xf32> to vector<1x16xf32>
    %c0_13 = arith.constant 0 : index
    %c0_14 = arith.constant 0 : index
    %12 = vector.load %arg11[%c0_13, %c0_14] : memref<3x48xf32, #tpu.memory_space<vmem>>, vector<3x48xf32>
    %13 = vector.extract_strided_slice %12 {offsets = [0, 0], sizes = [1, 48], strides = [1, 1]} : vector<3x48xf32> to vector<1x48xf32>
    %14 = vector.extract_strided_slice %12 {offsets = [1, 0], sizes = [1, 48], strides = [1, 1]} : vector<3x48xf32> to vector<1x48xf32>
    %15 = vector.extract_strided_slice %12 {offsets = [2, 0], sizes = [1, 48], strides = [1, 1]} : vector<3x48xf32> to vector<1x48xf32>
    %c0_15 = arith.constant 0 : index
    %c0_16 = arith.constant 0 : index
    %16 = vector.load %arg12[%c0_15, %c0_16] : memref<1x4xf32, #tpu.memory_space<vmem>>, vector<1x4xf32>
    %c0_17 = arith.constant 0 : index
    %c0_18 = arith.constant 0 : index
    %c0_19 = arith.constant 0 : index
    %17 = vector.load %arg1[%c0_17, %c0_18, %c0_19] : memref<2x8x16xf32, #tpu.memory_space<vmem>>, vector<2x8x16xf32>
    %18 = vector.shape_cast %17 : vector<2x8x16xf32> to vector<16x16xf32>
    %c0_20 = arith.constant 0 : index
    %c0_21 = arith.constant 0 : index
    %c0_22 = arith.constant 0 : index
    %19 = vector.load %arg2[%c0_20, %c0_21, %c0_22] : memref<2x8x8xf32, #tpu.memory_space<vmem>>, vector<2x8x8xf32>
    %c0_23 = arith.constant 0 : index
    %c0_24 = arith.constant 0 : index
    %c0_25 = arith.constant 0 : index
    %20 = vector.load %arg3[%c0_23, %c0_24, %c0_25] : memref<2x8x8xf32, #tpu.memory_space<vmem>>, vector<2x8x8xf32>
    %21 = vector.extract_strided_slice %19 {offsets = [0, 0, 0], sizes = [2, 8, 1], strides = [1, 1, 1]} : vector<2x8x8xf32> to vector<2x8x1xf32>
    %22 = vector.shape_cast %8 : vector<1x16xf32> to vector<1x1x16xf32>
    %23 = vector.broadcast %21 : vector<2x8x1xf32> to vector<2x8x16xf32>
    %24 = vector.broadcast %22 : vector<1x1x16xf32> to vector<2x8x16xf32>
    %25 = arith.mulf %23, %24 : vector<2x8x16xf32>
    %26 = vector.shape_cast %9 : vector<1x16xf32> to vector<1x1x16xf32>
    %27 = vector.broadcast %26 : vector<1x1x16xf32> to vector<2x8x16xf32>
    %28 = arith.addf %25, %27 : vector<2x8x16xf32>
    %29 = vector.extract_strided_slice %20 {offsets = [0, 0, 0], sizes = [2, 8, 1], strides = [1, 1, 1]} : vector<2x8x8xf32> to vector<2x8x1xf32>
    %30 = vector.shape_cast %29 : vector<2x8x1xf32> to vector<2x8x1xf32>
    %31 = vector.broadcast %30 : vector<2x8x1xf32> to vector<2x8x16xf32>
    %32 = vector.extract_strided_slice %19 {offsets = [0, 0, 1], sizes = [2, 8, 1], strides = [1, 1, 1]} : vector<2x8x8xf32> to vector<2x8x1xf32>
    %33 = vector.shape_cast %8 : vector<1x16xf32> to vector<1x1x16xf32>
    %34 = vector.broadcast %32 : vector<2x8x1xf32> to vector<2x8x16xf32>
    %35 = vector.broadcast %33 : vector<1x1x16xf32> to vector<2x8x16xf32>
    %36 = arith.mulf %34, %35 : vector<2x8x16xf32>
    %37 = vector.shape_cast %9 : vector<1x16xf32> to vector<1x1x16xf32>
    %38 = vector.broadcast %37 : vector<1x1x16xf32> to vector<2x8x16xf32>
    %39 = arith.addf %36, %38 : vector<2x8x16xf32>
    %40 = vector.extract_strided_slice %20 {offsets = [0, 0, 1], sizes = [2, 8, 1], strides = [1, 1, 1]} : vector<2x8x8xf32> to vector<2x8x1xf32>
    %41 = vector.shape_cast %40 : vector<2x8x1xf32> to vector<2x8x1xf32>
    %42 = vector.broadcast %41 : vector<2x8x1xf32> to vector<2x8x16xf32>
    %43 = vector.extract_strided_slice %19 {offsets = [0, 0, 2], sizes = [2, 8, 1], strides = [1, 1, 1]} : vector<2x8x8xf32> to vector<2x8x1xf32>
    %44 = vector.shape_cast %8 : vector<1x16xf32> to vector<1x1x16xf32>
    %45 = vector.broadcast %43 : vector<2x8x1xf32> to vector<2x8x16xf32>
    %46 = vector.broadcast %44 : vector<1x1x16xf32> to vector<2x8x16xf32>
    %47 = arith.mulf %45, %46 : vector<2x8x16xf32>
    %48 = vector.shape_cast %9 : vector<1x16xf32> to vector<1x1x16xf32>
    %49 = vector.broadcast %48 : vector<1x1x16xf32> to vector<2x8x16xf32>
    %50 = arith.addf %47, %49 : vector<2x8x16xf32>
    %51 = vector.extract_strided_slice %20 {offsets = [0, 0, 2], sizes = [2, 8, 1], strides = [1, 1, 1]} : vector<2x8x8xf32> to vector<2x8x1xf32>
    %52 = vector.shape_cast %51 : vector<2x8x1xf32> to vector<2x8x1xf32>
    %53 = vector.broadcast %52 : vector<2x8x1xf32> to vector<2x8x16xf32>
    %54 = vector.extract_strided_slice %19 {offsets = [0, 0, 3], sizes = [2, 8, 1], strides = [1, 1, 1]} : vector<2x8x8xf32> to vector<2x8x1xf32>
    %55 = vector.shape_cast %8 : vector<1x16xf32> to vector<1x1x16xf32>
    %56 = vector.broadcast %54 : vector<2x8x1xf32> to vector<2x8x16xf32>
    %57 = vector.broadcast %55 : vector<1x1x16xf32> to vector<2x8x16xf32>
    %58 = arith.mulf %56, %57 : vector<2x8x16xf32>
    %59 = vector.shape_cast %9 : vector<1x16xf32> to vector<1x1x16xf32>
    %60 = vector.broadcast %59 : vector<1x1x16xf32> to vector<2x8x16xf32>
    %61 = arith.addf %58, %60 : vector<2x8x16xf32>
    %62 = vector.extract_strided_slice %20 {offsets = [0, 0, 3], sizes = [2, 8, 1], strides = [1, 1, 1]} : vector<2x8x8xf32> to vector<2x8x1xf32>
    %63 = vector.shape_cast %62 : vector<2x8x1xf32> to vector<2x8x1xf32>
    %64 = vector.broadcast %63 : vector<2x8x1xf32> to vector<2x8x16xf32>
    %65 = vector.extract_strided_slice %19 {offsets = [0, 0, 4], sizes = [2, 8, 1], strides = [1, 1, 1]} : vector<2x8x8xf32> to vector<2x8x1xf32>
    %66 = vector.shape_cast %8 : vector<1x16xf32> to vector<1x1x16xf32>
    %67 = vector.broadcast %65 : vector<2x8x1xf32> to vector<2x8x16xf32>
    %68 = vector.broadcast %66 : vector<1x1x16xf32> to vector<2x8x16xf32>
    %69 = arith.mulf %67, %68 : vector<2x8x16xf32>
    %70 = vector.shape_cast %9 : vector<1x16xf32> to vector<1x1x16xf32>
    %71 = vector.broadcast %70 : vector<1x1x16xf32> to vector<2x8x16xf32>
    %72 = arith.addf %69, %71 : vector<2x8x16xf32>
    %73 = vector.extract_strided_slice %20 {offsets = [0, 0, 4], sizes = [2, 8, 1], strides = [1, 1, 1]} : vector<2x8x8xf32> to vector<2x8x1xf32>
    %74 = vector.shape_cast %73 : vector<2x8x1xf32> to vector<2x8x1xf32>
    %75 = vector.broadcast %74 : vector<2x8x1xf32> to vector<2x8x16xf32>
    %76 = vector.extract_strided_slice %19 {offsets = [0, 0, 5], sizes = [2, 8, 1], strides = [1, 1, 1]} : vector<2x8x8xf32> to vector<2x8x1xf32>
    %77 = vector.shape_cast %8 : vector<1x16xf32> to vector<1x1x16xf32>
    %78 = vector.broadcast %76 : vector<2x8x1xf32> to vector<2x8x16xf32>
    %79 = vector.broadcast %77 : vector<1x1x16xf32> to vector<2x8x16xf32>
    %80 = arith.mulf %78, %79 : vector<2x8x16xf32>
    %81 = vector.shape_cast %9 : vector<1x16xf32> to vector<1x1x16xf32>
    %82 = vector.broadcast %81 : vector<1x1x16xf32> to vector<2x8x16xf32>
    %83 = arith.addf %80, %82 : vector<2x8x16xf32>
    %84 = vector.extract_strided_slice %20 {offsets = [0, 0, 5], sizes = [2, 8, 1], strides = [1, 1, 1]} : vector<2x8x8xf32> to vector<2x8x1xf32>
    %85 = vector.shape_cast %84 : vector<2x8x1xf32> to vector<2x8x1xf32>
    %86 = vector.broadcast %85 : vector<2x8x1xf32> to vector<2x8x16xf32>
    %87 = vector.extract_strided_slice %19 {offsets = [0, 0, 6], sizes = [2, 8, 1], strides = [1, 1, 1]} : vector<2x8x8xf32> to vector<2x8x1xf32>
    %88 = vector.shape_cast %8 : vector<1x16xf32> to vector<1x1x16xf32>
    %89 = vector.broadcast %87 : vector<2x8x1xf32> to vector<2x8x16xf32>
    %90 = vector.broadcast %88 : vector<1x1x16xf32> to vector<2x8x16xf32>
    %91 = arith.mulf %89, %90 : vector<2x8x16xf32>
    %92 = vector.shape_cast %9 : vector<1x16xf32> to vector<1x1x16xf32>
    %93 = vector.broadcast %92 : vector<1x1x16xf32> to vector<2x8x16xf32>
    %94 = arith.addf %91, %93 : vector<2x8x16xf32>
    %95 = vector.extract_strided_slice %20 {offsets = [0, 0, 6], sizes = [2, 8, 1], strides = [1, 1, 1]} : vector<2x8x8xf32> to vector<2x8x1xf32>
    %96 = vector.shape_cast %95 : vector<2x8x1xf32> to vector<2x8x1xf32>
    %97 = vector.broadcast %96 : vector<2x8x1xf32> to vector<2x8x16xf32>
    %98 = vector.extract_strided_slice %19 {offsets = [0, 0, 7], sizes = [2, 8, 1], strides = [1, 1, 1]} : vector<2x8x8xf32> to vector<2x8x1xf32>
    %99 = vector.shape_cast %8 : vector<1x16xf32> to vector<1x1x16xf32>
    %100 = vector.broadcast %98 : vector<2x8x1xf32> to vector<2x8x16xf32>
    %101 = vector.broadcast %99 : vector<1x1x16xf32> to vector<2x8x16xf32>
    %102 = arith.mulf %100, %101 : vector<2x8x16xf32>
    %103 = vector.shape_cast %9 : vector<1x16xf32> to vector<1x1x16xf32>
    %104 = vector.broadcast %103 : vector<1x1x16xf32> to vector<2x8x16xf32>
    %105 = arith.addf %102, %104 : vector<2x8x16xf32>
    %106 = vector.extract_strided_slice %20 {offsets = [0, 0, 7], sizes = [2, 8, 1], strides = [1, 1, 1]} : vector<2x8x8xf32> to vector<2x8x1xf32>
    %107 = vector.shape_cast %106 : vector<2x8x1xf32> to vector<2x8x1xf32>
    %108 = vector.broadcast %107 : vector<2x8x1xf32> to vector<2x8x16xf32>
    %109 = tpu.concatenate %28, %39, %50, %61, %72, %83, %94, %105 in 2 : vector<2x8x16xf32>, vector<2x8x16xf32>, vector<2x8x16xf32>, vector<2x8x16xf32>, vector<2x8x16xf32>, vector<2x8x16xf32>, vector<2x8x16xf32>, vector<2x8x16xf32> -> vector<2x8x128xf32>
    %110 = tpu.concatenate %31, %42, %53, %64, %75, %86, %97, %108 in 2 : vector<2x8x16xf32>, vector<2x8x16xf32>, vector<2x8x16xf32>, vector<2x8x16xf32>, vector<2x8x16xf32>, vector<2x8x16xf32>, vector<2x8x16xf32>, vector<2x8x16xf32> -> vector<2x8x128xf32>
    %cst = arith.constant dense<0.000000e+00> : vector<2x8xf32>
    %111 = vector.multi_reduction <add>, %20, %cst [1] : vector<2x8x8xf32> to vector<2x8xf32>
    %112 = vector.extract_strided_slice %111 {offsets = [0, 0], sizes = [2, 1], strides = [1, 1]} : vector<2x8xf32> to vector<2x1xf32>
    %113 = vector.shape_cast %112 : vector<2x1xf32> to vector<2x1x1xf32>
    %114 = vector.extract_strided_slice %111 {offsets = [0, 1], sizes = [2, 1], strides = [1, 1]} : vector<2x8xf32> to vector<2x1xf32>
    %115 = vector.shape_cast %114 : vector<2x1xf32> to vector<2x1x1xf32>
    %116 = vector.extract_strided_slice %111 {offsets = [0, 2], sizes = [2, 1], strides = [1, 1]} : vector<2x8xf32> to vector<2x1xf32>
    %117 = vector.shape_cast %116 : vector<2x1xf32> to vector<2x1x1xf32>
    %118 = vector.extract_strided_slice %111 {offsets = [0, 3], sizes = [2, 1], strides = [1, 1]} : vector<2x8xf32> to vector<2x1xf32>
    %119 = vector.shape_cast %118 : vector<2x1xf32> to vector<2x1x1xf32>
    %120 = vector.extract_strided_slice %111 {offsets = [0, 4], sizes = [2, 1], strides = [1, 1]} : vector<2x8xf32> to vector<2x1xf32>
    %121 = vector.shape_cast %120 : vector<2x1xf32> to vector<2x1x1xf32>
    %122 = vector.extract_strided_slice %111 {offsets = [0, 5], sizes = [2, 1], strides = [1, 1]} : vector<2x8xf32> to vector<2x1xf32>
    %123 = vector.shape_cast %122 : vector<2x1xf32> to vector<2x1x1xf32>
    %124 = vector.extract_strided_slice %111 {offsets = [0, 6], sizes = [2, 1], strides = [1, 1]} : vector<2x8xf32> to vector<2x1xf32>
    %125 = vector.shape_cast %124 : vector<2x1xf32> to vector<2x1x1xf32>
    %126 = vector.extract_strided_slice %111 {offsets = [0, 7], sizes = [2, 1], strides = [1, 1]} : vector<2x8xf32> to vector<2x1xf32>
    %127 = vector.shape_cast %126 : vector<2x1xf32> to vector<2x1x1xf32>
    %128 = tpu.concatenate %113, %115, %117, %119, %121, %123, %125, %127 in 1 : vector<2x1x1xf32>, vector<2x1x1xf32>, vector<2x1x1xf32>, vector<2x1x1xf32>, vector<2x1x1xf32>, vector<2x1x1xf32>, vector<2x1x1xf32>, vector<2x1x1xf32> -> vector<2x8x1xf32>
    %129 = vector.shape_cast %128 : vector<2x8x1xf32> to vector<16x1xf32>
    %cst_26 = arith.constant dense<0.000000e+00> : vector<16x16xf32>
    %130 = tpu.matmul %18, %0, %cst_26 {dimension_numbers = #tpu.dot_dimension_numbers<[1], [0], [0], [1], [0, 0, 1, 1], [], []>} : vector<16x16xf32>, vector<16x16xf32>, vector<16x16xf32> -> vector<16x16xf32>
    %131 = vector.broadcast %7 : vector<1x16xf32> to vector<16x16xf32>
    %132 = arith.addf %130, %131 : vector<16x16xf32>
    %cst_27 = arith.constant dense<0.000000e+00> : vector<16x80xf32>
    %133 = tpu.matmul %132, %1, %cst_27 {dimension_numbers = #tpu.dot_dimension_numbers<[1], [0], [0], [1], [0, 0, 1, 1], [], []>} : vector<16x16xf32>, vector<16x80xf32>, vector<16x80xf32> -> vector<16x80xf32>
    %134 = vector.extract_strided_slice %133 {offsets = [0, 0], sizes = [16, 16], strides = [1, 1]} : vector<16x80xf32> to vector<16x16xf32>
    %135 = vector.shape_cast %134 : vector<16x16xf32> to vector<2x8x16xf32>
    %136 = vector.extract_strided_slice %133 {offsets = [0, 16], sizes = [16, 16], strides = [1, 1]} : vector<16x80xf32> to vector<16x16xf32>
    %137 = vector.shape_cast %136 : vector<16x16xf32> to vector<2x8x16xf32>
    %138 = vector.extract_strided_slice %133 {offsets = [0, 32], sizes = [16, 48], strides = [1, 1]} : vector<16x80xf32> to vector<16x48xf32>
    %139 = vector.broadcast %14 : vector<1x48xf32> to vector<16x48xf32>
    %140 = arith.addf %138, %139 : vector<16x48xf32>
    %141 = tpu.concatenate %135, %135, %135, %135, %135, %135, %135, %135 in 2 : vector<2x8x16xf32>, vector<2x8x16xf32>, vector<2x8x16xf32>, vector<2x8x16xf32>, vector<2x8x16xf32>, vector<2x8x16xf32>, vector<2x8x16xf32>, vector<2x8x16xf32> -> vector<2x8x128xf32>
    %142 = vector.extract_strided_slice %137 {offsets = [0, 0, 0], sizes = [2, 1, 16], strides = [1, 1, 1]} : vector<2x8x16xf32> to vector<2x1x16xf32>
    %143 = vector.extract_strided_slice %137 {offsets = [0, 1, 0], sizes = [2, 1, 16], strides = [1, 1, 1]} : vector<2x8x16xf32> to vector<2x1x16xf32>
    %144 = vector.extract_strided_slice %137 {offsets = [0, 2, 0], sizes = [2, 1, 16], strides = [1, 1, 1]} : vector<2x8x16xf32> to vector<2x1x16xf32>
    %145 = vector.extract_strided_slice %137 {offsets = [0, 3, 0], sizes = [2, 1, 16], strides = [1, 1, 1]} : vector<2x8x16xf32> to vector<2x1x16xf32>
    %146 = vector.extract_strided_slice %137 {offsets = [0, 4, 0], sizes = [2, 1, 16], strides = [1, 1, 1]} : vector<2x8x16xf32> to vector<2x1x16xf32>
    %147 = vector.extract_strided_slice %137 {offsets = [0, 5, 0], sizes = [2, 1, 16], strides = [1, 1, 1]} : vector<2x8x16xf32> to vector<2x1x16xf32>
    %148 = vector.extract_strided_slice %137 {offsets = [0, 6, 0], sizes = [2, 1, 16], strides = [1, 1, 1]} : vector<2x8x16xf32> to vector<2x1x16xf32>
    %149 = vector.extract_strided_slice %137 {offsets = [0, 7, 0], sizes = [2, 1, 16], strides = [1, 1, 1]} : vector<2x8x16xf32> to vector<2x1x16xf32>
    %150 = tpu.concatenate %142, %143, %144, %145, %146, %147, %148, %149 in 2 : vector<2x1x16xf32>, vector<2x1x16xf32>, vector<2x1x16xf32>, vector<2x1x16xf32>, vector<2x1x16xf32>, vector<2x1x16xf32>, vector<2x1x16xf32>, vector<2x1x16xf32> -> vector<2x1x128xf32>
    %151 = vector.broadcast %150 : vector<2x1x128xf32> to vector<2x8x128xf32>
    %152 = arith.addf %141, %151 : vector<2x8x128xf32>
    %153 = arith.addf %152, %109 : vector<2x8x128xf32>
    %cst_28 = arith.constant 0.000000e+00 : f32
    %154 = vector.broadcast %cst_28 : f32 to vector<2x8x128xf32>
    %155 = arith.cmpf ogt, %153, %154 : vector<2x8x128xf32>
    %cst_29 = arith.constant 0.000000e+00 : f32
    %156 = vector.broadcast %cst_29 : f32 to vector<2x8x128xf32>
    %157 = arith.minimumf %153, %156 : vector<2x8x128xf32>
    %158 = math.exp %157 : vector<2x8x128xf32>
    %cst_30 = arith.constant 1.000000e+00 : f32
    %159 = vector.broadcast %cst_30 : f32 to vector<2x8x128xf32>
    %160 = arith.subf %158, %159 : vector<2x8x128xf32>
    %cst_31 = arith.constant 1.67326319 : f32
    %161 = vector.broadcast %cst_31 : f32 to vector<2x8x128xf32>
    %162 = arith.mulf %161, %160 : vector<2x8x128xf32>
    %163 = arith.select %155, %153, %162 : vector<2x8x128xi1>, vector<2x8x128xf32>
    %cst_32 = arith.constant 1.05070102 : f32
    %164 = vector.broadcast %cst_32 : f32 to vector<2x8x128xf32>
    %165 = arith.mulf %164, %163 : vector<2x8x128xf32>
    %166 = arith.mulf %110, %165 : vector<2x8x128xf32>
    %cst_33 = arith.constant dense<0.000000e+00> : vector<2x128xf32>
    %167 = vector.multi_reduction <add>, %166, %cst_33 [1] : vector<2x8x128xf32> to vector<2x128xf32>
    %168 = vector.extract_strided_slice %167 {offsets = [0, 0], sizes = [2, 16], strides = [1, 1]} : vector<2x128xf32> to vector<2x16xf32>
    %169 = vector.shape_cast %168 : vector<2x16xf32> to vector<2x1x16xf32>
    %170 = vector.extract_strided_slice %167 {offsets = [0, 16], sizes = [2, 16], strides = [1, 1]} : vector<2x128xf32> to vector<2x16xf32>
    %171 = vector.shape_cast %170 : vector<2x16xf32> to vector<2x1x16xf32>
    %172 = vector.extract_strided_slice %167 {offsets = [0, 32], sizes = [2, 16], strides = [1, 1]} : vector<2x128xf32> to vector<2x16xf32>
    %173 = vector.shape_cast %172 : vector<2x16xf32> to vector<2x1x16xf32>
    %174 = vector.extract_strided_slice %167 {offsets = [0, 48], sizes = [2, 16], strides = [1, 1]} : vector<2x128xf32> to vector<2x16xf32>
    %175 = vector.shape_cast %174 : vector<2x16xf32> to vector<2x1x16xf32>
    %176 = vector.extract_strided_slice %167 {offsets = [0, 64], sizes = [2, 16], strides = [1, 1]} : vector<2x128xf32> to vector<2x16xf32>
    %177 = vector.shape_cast %176 : vector<2x16xf32> to vector<2x1x16xf32>
    %178 = vector.extract_strided_slice %167 {offsets = [0, 80], sizes = [2, 16], strides = [1, 1]} : vector<2x128xf32> to vector<2x16xf32>
    %179 = vector.shape_cast %178 : vector<2x16xf32> to vector<2x1x16xf32>
    %180 = vector.extract_strided_slice %167 {offsets = [0, 96], sizes = [2, 16], strides = [1, 1]} : vector<2x128xf32> to vector<2x16xf32>
    %181 = vector.shape_cast %180 : vector<2x16xf32> to vector<2x1x16xf32>
    %182 = vector.extract_strided_slice %167 {offsets = [0, 112], sizes = [2, 16], strides = [1, 1]} : vector<2x128xf32> to vector<2x16xf32>
    %183 = vector.shape_cast %182 : vector<2x16xf32> to vector<2x1x16xf32>
    %184 = tpu.concatenate %169, %171, %173, %175, %177, %179, %181, %183 in 1 : vector<2x1x16xf32>, vector<2x1x16xf32>, vector<2x1x16xf32>, vector<2x1x16xf32>, vector<2x1x16xf32>, vector<2x1x16xf32>, vector<2x1x16xf32>, vector<2x1x16xf32> -> vector<2x8x16xf32>
    %185 = vector.shape_cast %184 : vector<2x8x16xf32> to vector<16x16xf32>
    %cst_34 = arith.constant dense<0.000000e+00> : vector<16x48xf32>
    %186 = tpu.matmul %185, %2, %cst_34 {dimension_numbers = #tpu.dot_dimension_numbers<[1], [0], [0], [1], [0, 0, 1, 1], [], []>} : vector<16x16xf32>, vector<16x48xf32>, vector<16x48xf32> -> vector<16x48xf32>
    %187 = vector.broadcast %129 : vector<16x1xf32> to vector<16x48xf32>
    %188 = vector.broadcast %15 : vector<1x48xf32> to vector<16x48xf32>
    %189 = arith.mulf %187, %188 : vector<16x48xf32>
    %190 = arith.addf %186, %189 : vector<16x48xf32>
    %191 = vector.broadcast %13 : vector<1x48xf32> to vector<16x48xf32>
    %192 = arith.addf %190, %191 : vector<16x48xf32>
    %193 = vector.extract_strided_slice %192 {offsets = [0, 0], sizes = [16, 16], strides = [1, 1]} : vector<16x48xf32> to vector<16x16xf32>
    %194 = vector.extract_strided_slice %140 {offsets = [0, 0], sizes = [16, 16], strides = [1, 1]} : vector<16x48xf32> to vector<16x16xf32>
    %195 = arith.addf %193, %194 : vector<16x16xf32>
    %196 = arith.negf %195 : vector<16x16xf32>
    %197 = math.exp %196 : vector<16x16xf32>
    %cst_35 = arith.constant 1.000000e+00 : f32
    %198 = vector.broadcast %cst_35 : f32 to vector<16x16xf32>
    %199 = arith.addf %198, %197 : vector<16x16xf32>
    %200 = arith.divf %198, %199 : vector<16x16xf32>
    %201 = vector.extract_strided_slice %192 {offsets = [0, 16], sizes = [16, 16], strides = [1, 1]} : vector<16x48xf32> to vector<16x16xf32>
    %202 = vector.extract_strided_slice %140 {offsets = [0, 16], sizes = [16, 16], strides = [1, 1]} : vector<16x48xf32> to vector<16x16xf32>
    %203 = arith.addf %201, %202 : vector<16x16xf32>
    %204 = arith.negf %203 : vector<16x16xf32>
    %205 = math.exp %204 : vector<16x16xf32>
    %cst_36 = arith.constant 1.000000e+00 : f32
    %206 = vector.broadcast %cst_36 : f32 to vector<16x16xf32>
    %207 = arith.addf %206, %205 : vector<16x16xf32>
    %208 = arith.divf %206, %207 : vector<16x16xf32>
    %209 = vector.extract_strided_slice %192 {offsets = [0, 32], sizes = [16, 16], strides = [1, 1]} : vector<16x48xf32> to vector<16x16xf32>
    %210 = vector.extract_strided_slice %140 {offsets = [0, 32], sizes = [16, 16], strides = [1, 1]} : vector<16x48xf32> to vector<16x16xf32>
    %211 = arith.mulf %200, %210 : vector<16x16xf32>
    %212 = arith.addf %209, %211 : vector<16x16xf32>
    %213 = math.tanh %212 : vector<16x16xf32>
    %cst_37 = arith.constant 1.000000e+00 : f32
    %214 = vector.broadcast %cst_37 : f32 to vector<16x16xf32>
    %215 = arith.subf %214, %208 : vector<16x16xf32>
    %216 = arith.mulf %215, %213 : vector<16x16xf32>
    %217 = arith.mulf %208, %132 : vector<16x16xf32>
    %218 = arith.addf %216, %217 : vector<16x16xf32>
    %cst_38 = arith.constant dense<0.000000e+00> : vector<16x80xf32>
    %219 = tpu.matmul %218, %1, %cst_38 {dimension_numbers = #tpu.dot_dimension_numbers<[1], [0], [0], [1], [0, 0, 1, 1], [], []>} : vector<16x16xf32>, vector<16x80xf32>, vector<16x80xf32> -> vector<16x80xf32>
    %220 = vector.extract_strided_slice %219 {offsets = [0, 0], sizes = [16, 16], strides = [1, 1]} : vector<16x80xf32> to vector<16x16xf32>
    %221 = vector.shape_cast %220 : vector<16x16xf32> to vector<2x8x16xf32>
    %222 = vector.extract_strided_slice %219 {offsets = [0, 16], sizes = [16, 16], strides = [1, 1]} : vector<16x80xf32> to vector<16x16xf32>
    %223 = vector.shape_cast %222 : vector<16x16xf32> to vector<2x8x16xf32>
    %224 = vector.extract_strided_slice %219 {offsets = [0, 32], sizes = [16, 48], strides = [1, 1]} : vector<16x80xf32> to vector<16x48xf32>
    %225 = vector.broadcast %14 : vector<1x48xf32> to vector<16x48xf32>
    %226 = arith.addf %224, %225 : vector<16x48xf32>
    %227 = tpu.concatenate %221, %221, %221, %221, %221, %221, %221, %221 in 2 : vector<2x8x16xf32>, vector<2x8x16xf32>, vector<2x8x16xf32>, vector<2x8x16xf32>, vector<2x8x16xf32>, vector<2x8x16xf32>, vector<2x8x16xf32>, vector<2x8x16xf32> -> vector<2x8x128xf32>
    %228 = vector.extract_strided_slice %223 {offsets = [0, 0, 0], sizes = [2, 1, 16], strides = [1, 1, 1]} : vector<2x8x16xf32> to vector<2x1x16xf32>
    %229 = vector.extract_strided_slice %223 {offsets = [0, 1, 0], sizes = [2, 1, 16], strides = [1, 1, 1]} : vector<2x8x16xf32> to vector<2x1x16xf32>
    %230 = vector.extract_strided_slice %223 {offsets = [0, 2, 0], sizes = [2, 1, 16], strides = [1, 1, 1]} : vector<2x8x16xf32> to vector<2x1x16xf32>
    %231 = vector.extract_strided_slice %223 {offsets = [0, 3, 0], sizes = [2, 1, 16], strides = [1, 1, 1]} : vector<2x8x16xf32> to vector<2x1x16xf32>
    %232 = vector.extract_strided_slice %223 {offsets = [0, 4, 0], sizes = [2, 1, 16], strides = [1, 1, 1]} : vector<2x8x16xf32> to vector<2x1x16xf32>
    %233 = vector.extract_strided_slice %223 {offsets = [0, 5, 0], sizes = [2, 1, 16], strides = [1, 1, 1]} : vector<2x8x16xf32> to vector<2x1x16xf32>
    %234 = vector.extract_strided_slice %223 {offsets = [0, 6, 0], sizes = [2, 1, 16], strides = [1, 1, 1]} : vector<2x8x16xf32> to vector<2x1x16xf32>
    %235 = vector.extract_strided_slice %223 {offsets = [0, 7, 0], sizes = [2, 1, 16], strides = [1, 1, 1]} : vector<2x8x16xf32> to vector<2x1x16xf32>
    %236 = tpu.concatenate %228, %229, %230, %231, %232, %233, %234, %235 in 2 : vector<2x1x16xf32>, vector<2x1x16xf32>, vector<2x1x16xf32>, vector<2x1x16xf32>, vector<2x1x16xf32>, vector<2x1x16xf32>, vector<2x1x16xf32>, vector<2x1x16xf32> -> vector<2x1x128xf32>
    %237 = vector.broadcast %236 : vector<2x1x128xf32> to vector<2x8x128xf32>
    %238 = arith.addf %227, %237 : vector<2x8x128xf32>
    %239 = arith.addf %238, %109 : vector<2x8x128xf32>
    %cst_39 = arith.constant 0.000000e+00 : f32
    %240 = vector.broadcast %cst_39 : f32 to vector<2x8x128xf32>
    %241 = arith.cmpf ogt, %239, %240 : vector<2x8x128xf32>
    %cst_40 = arith.constant 0.000000e+00 : f32
    %242 = vector.broadcast %cst_40 : f32 to vector<2x8x128xf32>
    %243 = arith.minimumf %239, %242 : vector<2x8x128xf32>
    %244 = math.exp %243 : vector<2x8x128xf32>
    %cst_41 = arith.constant 1.000000e+00 : f32
    %245 = vector.broadcast %cst_41 : f32 to vector<2x8x128xf32>
    %246 = arith.subf %244, %245 : vector<2x8x128xf32>
    %cst_42 = arith.constant 1.67326319 : f32
    %247 = vector.broadcast %cst_42 : f32 to vector<2x8x128xf32>
    %248 = arith.mulf %247, %246 : vector<2x8x128xf32>
    %249 = arith.select %241, %239, %248 : vector<2x8x128xi1>, vector<2x8x128xf32>
    %cst_43 = arith.constant 1.05070102 : f32
    %250 = vector.broadcast %cst_43 : f32 to vector<2x8x128xf32>
    %251 = arith.mulf %250, %249 : vector<2x8x128xf32>
    %252 = arith.mulf %110, %251 : vector<2x8x128xf32>
    %cst_44 = arith.constant dense<0.000000e+00> : vector<2x128xf32>
    %253 = vector.multi_reduction <add>, %252, %cst_44 [1] : vector<2x8x128xf32> to vector<2x128xf32>
    %254 = vector.extract_strided_slice %253 {offsets = [0, 0], sizes = [2, 16], strides = [1, 1]} : vector<2x128xf32> to vector<2x16xf32>
    %255 = vector.shape_cast %254 : vector<2x16xf32> to vector<2x1x16xf32>
    %256 = vector.extract_strided_slice %253 {offsets = [0, 16], sizes = [2, 16], strides = [1, 1]} : vector<2x128xf32> to vector<2x16xf32>
    %257 = vector.shape_cast %256 : vector<2x16xf32> to vector<2x1x16xf32>
    %258 = vector.extract_strided_slice %253 {offsets = [0, 32], sizes = [2, 16], strides = [1, 1]} : vector<2x128xf32> to vector<2x16xf32>
    %259 = vector.shape_cast %258 : vector<2x16xf32> to vector<2x1x16xf32>
    %260 = vector.extract_strided_slice %253 {offsets = [0, 48], sizes = [2, 16], strides = [1, 1]} : vector<2x128xf32> to vector<2x16xf32>
    %261 = vector.shape_cast %260 : vector<2x16xf32> to vector<2x1x16xf32>
    %262 = vector.extract_strided_slice %253 {offsets = [0, 64], sizes = [2, 16], strides = [1, 1]} : vector<2x128xf32> to vector<2x16xf32>
    %263 = vector.shape_cast %262 : vector<2x16xf32> to vector<2x1x16xf32>
    %264 = vector.extract_strided_slice %253 {offsets = [0, 80], sizes = [2, 16], strides = [1, 1]} : vector<2x128xf32> to vector<2x16xf32>
    %265 = vector.shape_cast %264 : vector<2x16xf32> to vector<2x1x16xf32>
    %266 = vector.extract_strided_slice %253 {offsets = [0, 96], sizes = [2, 16], strides = [1, 1]} : vector<2x128xf32> to vector<2x16xf32>
    %267 = vector.shape_cast %266 : vector<2x16xf32> to vector<2x1x16xf32>
    %268 = vector.extract_strided_slice %253 {offsets = [0, 112], sizes = [2, 16], strides = [1, 1]} : vector<2x128xf32> to vector<2x16xf32>
    %269 = vector.shape_cast %268 : vector<2x16xf32> to vector<2x1x16xf32>
    %270 = tpu.concatenate %255, %257, %259, %261, %263, %265, %267, %269 in 1 : vector<2x1x16xf32>, vector<2x1x16xf32>, vector<2x1x16xf32>, vector<2x1x16xf32>, vector<2x1x16xf32>, vector<2x1x16xf32>, vector<2x1x16xf32>, vector<2x1x16xf32> -> vector<2x8x16xf32>
    %271 = vector.shape_cast %270 : vector<2x8x16xf32> to vector<16x16xf32>
    %cst_45 = arith.constant dense<0.000000e+00> : vector<16x48xf32>
    %272 = tpu.matmul %271, %2, %cst_45 {dimension_numbers = #tpu.dot_dimension_numbers<[1], [0], [0], [1], [0, 0, 1, 1], [], []>} : vector<16x16xf32>, vector<16x48xf32>, vector<16x48xf32> -> vector<16x48xf32>
    %273 = vector.broadcast %129 : vector<16x1xf32> to vector<16x48xf32>
    %274 = vector.broadcast %15 : vector<1x48xf32> to vector<16x48xf32>
    %275 = arith.mulf %273, %274 : vector<16x48xf32>
    %276 = arith.addf %272, %275 : vector<16x48xf32>
    %277 = vector.broadcast %13 : vector<1x48xf32> to vector<16x48xf32>
    %278 = arith.addf %276, %277 : vector<16x48xf32>
    %279 = vector.extract_strided_slice %278 {offsets = [0, 0], sizes = [16, 16], strides = [1, 1]} : vector<16x48xf32> to vector<16x16xf32>
    %280 = vector.extract_strided_slice %226 {offsets = [0, 0], sizes = [16, 16], strides = [1, 1]} : vector<16x48xf32> to vector<16x16xf32>
    %281 = arith.addf %279, %280 : vector<16x16xf32>
    %282 = arith.negf %281 : vector<16x16xf32>
    %283 = math.exp %282 : vector<16x16xf32>
    %cst_46 = arith.constant 1.000000e+00 : f32
    %284 = vector.broadcast %cst_46 : f32 to vector<16x16xf32>
    %285 = arith.addf %284, %283 : vector<16x16xf32>
    %286 = arith.divf %284, %285 : vector<16x16xf32>
    %287 = vector.extract_strided_slice %278 {offsets = [0, 16], sizes = [16, 16], strides = [1, 1]} : vector<16x48xf32> to vector<16x16xf32>
    %288 = vector.extract_strided_slice %226 {offsets = [0, 16], sizes = [16, 16], strides = [1, 1]} : vector<16x48xf32> to vector<16x16xf32>
    %289 = arith.addf %287, %288 : vector<16x16xf32>
    %290 = arith.negf %289 : vector<16x16xf32>
    %291 = math.exp %290 : vector<16x16xf32>
    %cst_47 = arith.constant 1.000000e+00 : f32
    %292 = vector.broadcast %cst_47 : f32 to vector<16x16xf32>
    %293 = arith.addf %292, %291 : vector<16x16xf32>
    %294 = arith.divf %292, %293 : vector<16x16xf32>
    %295 = vector.extract_strided_slice %278 {offsets = [0, 32], sizes = [16, 16], strides = [1, 1]} : vector<16x48xf32> to vector<16x16xf32>
    %296 = vector.extract_strided_slice %226 {offsets = [0, 32], sizes = [16, 16], strides = [1, 1]} : vector<16x48xf32> to vector<16x16xf32>
    %297 = arith.mulf %286, %296 : vector<16x16xf32>
    %298 = arith.addf %295, %297 : vector<16x16xf32>
    %299 = math.tanh %298 : vector<16x16xf32>
    %cst_48 = arith.constant 1.000000e+00 : f32
    %300 = vector.broadcast %cst_48 : f32 to vector<16x16xf32>
    %301 = arith.subf %300, %294 : vector<16x16xf32>
    %302 = arith.mulf %301, %299 : vector<16x16xf32>
    %303 = arith.mulf %294, %218 : vector<16x16xf32>
    %304 = arith.addf %302, %303 : vector<16x16xf32>
    %cst_49 = arith.constant dense<0.000000e+00> : vector<16x80xf32>
    %305 = tpu.matmul %304, %1, %cst_49 {dimension_numbers = #tpu.dot_dimension_numbers<[1], [0], [0], [1], [0, 0, 1, 1], [], []>} : vector<16x16xf32>, vector<16x80xf32>, vector<16x80xf32> -> vector<16x80xf32>
    %306 = vector.extract_strided_slice %305 {offsets = [0, 0], sizes = [16, 16], strides = [1, 1]} : vector<16x80xf32> to vector<16x16xf32>
    %307 = vector.shape_cast %306 : vector<16x16xf32> to vector<2x8x16xf32>
    %308 = vector.extract_strided_slice %305 {offsets = [0, 16], sizes = [16, 16], strides = [1, 1]} : vector<16x80xf32> to vector<16x16xf32>
    %309 = vector.shape_cast %308 : vector<16x16xf32> to vector<2x8x16xf32>
    %310 = vector.extract_strided_slice %305 {offsets = [0, 32], sizes = [16, 48], strides = [1, 1]} : vector<16x80xf32> to vector<16x48xf32>
    %311 = vector.broadcast %14 : vector<1x48xf32> to vector<16x48xf32>
    %312 = arith.addf %310, %311 : vector<16x48xf32>
    %313 = tpu.concatenate %307, %307, %307, %307, %307, %307, %307, %307 in 2 : vector<2x8x16xf32>, vector<2x8x16xf32>, vector<2x8x16xf32>, vector<2x8x16xf32>, vector<2x8x16xf32>, vector<2x8x16xf32>, vector<2x8x16xf32>, vector<2x8x16xf32> -> vector<2x8x128xf32>
    %314 = vector.extract_strided_slice %309 {offsets = [0, 0, 0], sizes = [2, 1, 16], strides = [1, 1, 1]} : vector<2x8x16xf32> to vector<2x1x16xf32>
    %315 = vector.extract_strided_slice %309 {offsets = [0, 1, 0], sizes = [2, 1, 16], strides = [1, 1, 1]} : vector<2x8x16xf32> to vector<2x1x16xf32>
    %316 = vector.extract_strided_slice %309 {offsets = [0, 2, 0], sizes = [2, 1, 16], strides = [1, 1, 1]} : vector<2x8x16xf32> to vector<2x1x16xf32>
    %317 = vector.extract_strided_slice %309 {offsets = [0, 3, 0], sizes = [2, 1, 16], strides = [1, 1, 1]} : vector<2x8x16xf32> to vector<2x1x16xf32>
    %318 = vector.extract_strided_slice %309 {offsets = [0, 4, 0], sizes = [2, 1, 16], strides = [1, 1, 1]} : vector<2x8x16xf32> to vector<2x1x16xf32>
    %319 = vector.extract_strided_slice %309 {offsets = [0, 5, 0], sizes = [2, 1, 16], strides = [1, 1, 1]} : vector<2x8x16xf32> to vector<2x1x16xf32>
    %320 = vector.extract_strided_slice %309 {offsets = [0, 6, 0], sizes = [2, 1, 16], strides = [1, 1, 1]} : vector<2x8x16xf32> to vector<2x1x16xf32>
    %321 = vector.extract_strided_slice %309 {offsets = [0, 7, 0], sizes = [2, 1, 16], strides = [1, 1, 1]} : vector<2x8x16xf32> to vector<2x1x16xf32>
    %322 = tpu.concatenate %314, %315, %316, %317, %318, %319, %320, %321 in 2 : vector<2x1x16xf32>, vector<2x1x16xf32>, vector<2x1x16xf32>, vector<2x1x16xf32>, vector<2x1x16xf32>, vector<2x1x16xf32>, vector<2x1x16xf32>, vector<2x1x16xf32> -> vector<2x1x128xf32>
    %323 = vector.broadcast %322 : vector<2x1x128xf32> to vector<2x8x128xf32>
    %324 = arith.addf %313, %323 : vector<2x8x128xf32>
    %325 = arith.addf %324, %109 : vector<2x8x128xf32>
    %cst_50 = arith.constant 0.000000e+00 : f32
    %326 = vector.broadcast %cst_50 : f32 to vector<2x8x128xf32>
    %327 = arith.cmpf ogt, %325, %326 : vector<2x8x128xf32>
    %cst_51 = arith.constant 0.000000e+00 : f32
    %328 = vector.broadcast %cst_51 : f32 to vector<2x8x128xf32>
    %329 = arith.minimumf %325, %328 : vector<2x8x128xf32>
    %330 = math.exp %329 : vector<2x8x128xf32>
    %cst_52 = arith.constant 1.000000e+00 : f32
    %331 = vector.broadcast %cst_52 : f32 to vector<2x8x128xf32>
    %332 = arith.subf %330, %331 : vector<2x8x128xf32>
    %cst_53 = arith.constant 1.67326319 : f32
    %333 = vector.broadcast %cst_53 : f32 to vector<2x8x128xf32>
    %334 = arith.mulf %333, %332 : vector<2x8x128xf32>
    %335 = arith.select %327, %325, %334 : vector<2x8x128xi1>, vector<2x8x128xf32>
    %cst_54 = arith.constant 1.05070102 : f32
    %336 = vector.broadcast %cst_54 : f32 to vector<2x8x128xf32>
    %337 = arith.mulf %336, %335 : vector<2x8x128xf32>
    %338 = arith.mulf %110, %337 : vector<2x8x128xf32>
    %cst_55 = arith.constant dense<0.000000e+00> : vector<2x128xf32>
    %339 = vector.multi_reduction <add>, %338, %cst_55 [1] : vector<2x8x128xf32> to vector<2x128xf32>
    %340 = vector.extract_strided_slice %339 {offsets = [0, 0], sizes = [2, 16], strides = [1, 1]} : vector<2x128xf32> to vector<2x16xf32>
    %341 = vector.shape_cast %340 : vector<2x16xf32> to vector<2x1x16xf32>
    %342 = vector.extract_strided_slice %339 {offsets = [0, 16], sizes = [2, 16], strides = [1, 1]} : vector<2x128xf32> to vector<2x16xf32>
    %343 = vector.shape_cast %342 : vector<2x16xf32> to vector<2x1x16xf32>
    %344 = vector.extract_strided_slice %339 {offsets = [0, 32], sizes = [2, 16], strides = [1, 1]} : vector<2x128xf32> to vector<2x16xf32>
    %345 = vector.shape_cast %344 : vector<2x16xf32> to vector<2x1x16xf32>
    %346 = vector.extract_strided_slice %339 {offsets = [0, 48], sizes = [2, 16], strides = [1, 1]} : vector<2x128xf32> to vector<2x16xf32>
    %347 = vector.shape_cast %346 : vector<2x16xf32> to vector<2x1x16xf32>
    %348 = vector.extract_strided_slice %339 {offsets = [0, 64], sizes = [2, 16], strides = [1, 1]} : vector<2x128xf32> to vector<2x16xf32>
    %349 = vector.shape_cast %348 : vector<2x16xf32> to vector<2x1x16xf32>
    %350 = vector.extract_strided_slice %339 {offsets = [0, 80], sizes = [2, 16], strides = [1, 1]} : vector<2x128xf32> to vector<2x16xf32>
    %351 = vector.shape_cast %350 : vector<2x16xf32> to vector<2x1x16xf32>
    %352 = vector.extract_strided_slice %339 {offsets = [0, 96], sizes = [2, 16], strides = [1, 1]} : vector<2x128xf32> to vector<2x16xf32>
    %353 = vector.shape_cast %352 : vector<2x16xf32> to vector<2x1x16xf32>
    %354 = vector.extract_strided_slice %339 {offsets = [0, 112], sizes = [2, 16], strides = [1, 1]} : vector<2x128xf32> to vector<2x16xf32>
    %355 = vector.shape_cast %354 : vector<2x16xf32> to vector<2x1x16xf32>
    %356 = tpu.concatenate %341, %343, %345, %347, %349, %351, %353, %355 in 1 : vector<2x1x16xf32>, vector<2x1x16xf32>, vector<2x1x16xf32>, vector<2x1x16xf32>, vector<2x1x16xf32>, vector<2x1x16xf32>, vector<2x1x16xf32>, vector<2x1x16xf32> -> vector<2x8x16xf32>
    %357 = vector.shape_cast %356 : vector<2x8x16xf32> to vector<16x16xf32>
    %cst_56 = arith.constant dense<0.000000e+00> : vector<16x48xf32>
    %358 = tpu.matmul %357, %2, %cst_56 {dimension_numbers = #tpu.dot_dimension_numbers<[1], [0], [0], [1], [0, 0, 1, 1], [], []>} : vector<16x16xf32>, vector<16x48xf32>, vector<16x48xf32> -> vector<16x48xf32>
    %359 = vector.broadcast %129 : vector<16x1xf32> to vector<16x48xf32>
    %360 = vector.broadcast %15 : vector<1x48xf32> to vector<16x48xf32>
    %361 = arith.mulf %359, %360 : vector<16x48xf32>
    %362 = arith.addf %358, %361 : vector<16x48xf32>
    %363 = vector.broadcast %13 : vector<1x48xf32> to vector<16x48xf32>
    %364 = arith.addf %362, %363 : vector<16x48xf32>
    %365 = vector.extract_strided_slice %364 {offsets = [0, 0], sizes = [16, 16], strides = [1, 1]} : vector<16x48xf32> to vector<16x16xf32>
    %366 = vector.extract_strided_slice %312 {offsets = [0, 0], sizes = [16, 16], strides = [1, 1]} : vector<16x48xf32> to vector<16x16xf32>
    %367 = arith.addf %365, %366 : vector<16x16xf32>
    %368 = arith.negf %367 : vector<16x16xf32>
    %369 = math.exp %368 : vector<16x16xf32>
    %cst_57 = arith.constant 1.000000e+00 : f32
    %370 = vector.broadcast %cst_57 : f32 to vector<16x16xf32>
    %371 = arith.addf %370, %369 : vector<16x16xf32>
    %372 = arith.divf %370, %371 : vector<16x16xf32>
    %373 = vector.extract_strided_slice %364 {offsets = [0, 16], sizes = [16, 16], strides = [1, 1]} : vector<16x48xf32> to vector<16x16xf32>
    %374 = vector.extract_strided_slice %312 {offsets = [0, 16], sizes = [16, 16], strides = [1, 1]} : vector<16x48xf32> to vector<16x16xf32>
    %375 = arith.addf %373, %374 : vector<16x16xf32>
    %376 = arith.negf %375 : vector<16x16xf32>
    %377 = math.exp %376 : vector<16x16xf32>
    %cst_58 = arith.constant 1.000000e+00 : f32
    %378 = vector.broadcast %cst_58 : f32 to vector<16x16xf32>
    %379 = arith.addf %378, %377 : vector<16x16xf32>
    %380 = arith.divf %378, %379 : vector<16x16xf32>
    %381 = vector.extract_strided_slice %364 {offsets = [0, 32], sizes = [16, 16], strides = [1, 1]} : vector<16x48xf32> to vector<16x16xf32>
    %382 = vector.extract_strided_slice %312 {offsets = [0, 32], sizes = [16, 16], strides = [1, 1]} : vector<16x48xf32> to vector<16x16xf32>
    %383 = arith.mulf %372, %382 : vector<16x16xf32>
    %384 = arith.addf %381, %383 : vector<16x16xf32>
    %385 = math.tanh %384 : vector<16x16xf32>
    %cst_59 = arith.constant 1.000000e+00 : f32
    %386 = vector.broadcast %cst_59 : f32 to vector<16x16xf32>
    %387 = arith.subf %386, %380 : vector<16x16xf32>
    %388 = arith.mulf %387, %385 : vector<16x16xf32>
    %389 = arith.mulf %380, %304 : vector<16x16xf32>
    %390 = arith.addf %388, %389 : vector<16x16xf32>
    %391 = vector.shape_cast %390 : vector<16x16xf32> to vector<2x8x16xf32>
    %cst_60 = arith.constant dense<0.000000e+00> : vector<2x16xf32>
    %392 = vector.multi_reduction <add>, %391, %cst_60 [1] : vector<2x8x16xf32> to vector<2x16xf32>
    %cst_61 = arith.constant dense<0.000000e+00> : vector<2x16xf32>
    %393 = tpu.matmul %392, %3, %cst_61 {dimension_numbers = #tpu.dot_dimension_numbers<[1], [0], [0], [1], [0, 0, 1, 1], [], []>} : vector<2x16xf32>, vector<16x16xf32>, vector<2x16xf32> -> vector<2x16xf32>
    %394 = vector.broadcast %10 : vector<1x16xf32> to vector<2x16xf32>
    %395 = arith.addf %393, %394 : vector<2x16xf32>
    %cst_62 = arith.constant 0.000000e+00 : f32
    %396 = vector.broadcast %cst_62 : f32 to vector<2x16xf32>
    %397 = arith.cmpf ogt, %395, %396 : vector<2x16xf32>
    %cst_63 = arith.constant 0.000000e+00 : f32
    %398 = vector.broadcast %cst_63 : f32 to vector<2x16xf32>
    %399 = arith.minimumf %395, %398 : vector<2x16xf32>
    %400 = math.exp %399 : vector<2x16xf32>
    %cst_64 = arith.constant 1.000000e+00 : f32
    %401 = vector.broadcast %cst_64 : f32 to vector<2x16xf32>
    %402 = arith.subf %400, %401 : vector<2x16xf32>
    %cst_65 = arith.constant 1.67326319 : f32
    %403 = vector.broadcast %cst_65 : f32 to vector<2x16xf32>
    %404 = arith.mulf %403, %402 : vector<2x16xf32>
    %405 = arith.select %397, %395, %404 : vector<2x16xi1>, vector<2x16xf32>
    %cst_66 = arith.constant 1.05070102 : f32
    %406 = vector.broadcast %cst_66 : f32 to vector<2x16xf32>
    %407 = arith.mulf %406, %405 : vector<2x16xf32>
    %cst_67 = arith.constant dense<0.000000e+00> : vector<2x16xf32>
    %408 = tpu.matmul %407, %4, %cst_67 {dimension_numbers = #tpu.dot_dimension_numbers<[1], [0], [0], [1], [0, 0, 1, 1], [], []>} : vector<2x16xf32>, vector<16x16xf32>, vector<2x16xf32> -> vector<2x16xf32>
    %409 = vector.broadcast %11 : vector<1x16xf32> to vector<2x16xf32>
    %410 = arith.addf %408, %409 : vector<2x16xf32>
    %cst_68 = arith.constant 0.000000e+00 : f32
    %411 = vector.broadcast %cst_68 : f32 to vector<2x16xf32>
    %412 = arith.cmpf ogt, %410, %411 : vector<2x16xf32>
    %cst_69 = arith.constant 0.000000e+00 : f32
    %413 = vector.broadcast %cst_69 : f32 to vector<2x16xf32>
    %414 = arith.minimumf %410, %413 : vector<2x16xf32>
    %415 = math.exp %414 : vector<2x16xf32>
    %cst_70 = arith.constant 1.000000e+00 : f32
    %416 = vector.broadcast %cst_70 : f32 to vector<2x16xf32>
    %417 = arith.subf %415, %416 : vector<2x16xf32>
    %cst_71 = arith.constant 1.67326319 : f32
    %418 = vector.broadcast %cst_71 : f32 to vector<2x16xf32>
    %419 = arith.mulf %418, %417 : vector<2x16xf32>
    %420 = arith.select %412, %410, %419 : vector<2x16xi1>, vector<2x16xf32>
    %cst_72 = arith.constant 1.05070102 : f32
    %421 = vector.broadcast %cst_72 : f32 to vector<2x16xf32>
    %422 = arith.mulf %421, %420 : vector<2x16xf32>
    %cst_73 = arith.constant dense<0.000000e+00> : vector<2x4xf32>
    %423 = tpu.matmul %422, %5, %cst_73 {dimension_numbers = #tpu.dot_dimension_numbers<[1], [0], [0], [1], [0, 0, 1, 1], [], []>} : vector<2x16xf32>, vector<16x4xf32>, vector<2x4xf32> -> vector<2x4xf32>
    %424 = vector.broadcast %16 : vector<1x4xf32> to vector<2x4xf32>
    %425 = arith.addf %423, %424 : vector<2x4xf32>
    %426 = vector.shape_cast %425 : vector<2x4xf32> to vector<1x2x4xf32>
    %c0_74 = arith.constant 0 : index
    %c0_75 = arith.constant 0 : index
    %c0_76 = arith.constant 0 : index
    %427 = vector.load %arg13[%c0_74, %c0_75, %c0_76] : memref<1x2x4xf32, #tpu.memory_space<vmem>>, vector<1x2x4xf32>
    tpu.vector_store %arg13[%c0_74, %c0_75, %c0_76], %426 {strides = array<i32>} : memref<1x2x4xf32, #tpu.memory_space<vmem>>, vector<1x2x4xf32>,
    return
  }
  func.func @transform_0(%arg0: i32) -> (i32, i32, i32) {
    %c0_i32 = arith.constant 0 : i32
    %c0_i32_0 = arith.constant 0 : i32
    %c0_i32_1 = arith.constant 0 : i32
    return %arg0, %c0_i32, %c0_i32_0 : i32, i32, i32
  }
  func.func @transform_1(%arg0: i32) -> (i32, i32, i32) {
    %c0_i32 = arith.constant 0 : i32
    %c0_i32_0 = arith.constant 0 : i32
    %c0_i32_1 = arith.constant 0 : i32
    return %arg0, %c0_i32, %c0_i32_0 : i32, i32, i32
  }
  func.func @transform_2(%arg0: i32) -> (i32, i32, i32) {
    %c0_i32 = arith.constant 0 : i32
    %c0_i32_0 = arith.constant 0 : i32
    %c0_i32_1 = arith.constant 0 : i32
    return %arg0, %c0_i32, %c0_i32_0 : i32, i32, i32
  }
  func.func @transform_3(%arg0: i32) -> (i32, i32) {
    %c0_i32 = arith.constant 0 : i32
    %c0_i32_0 = arith.constant 0 : i32
    %c0_i32_1 = arith.constant 0 : i32
    return %c0_i32, %c0_i32_0 : i32, i32
  }
  func.func @transform_4(%arg0: i32) -> (i32, i32) {
    %c0_i32 = arith.constant 0 : i32
    %c0_i32_0 = arith.constant 0 : i32
    %c0_i32_1 = arith.constant 0 : i32
    return %c0_i32, %c0_i32_0 : i32, i32
  }
  func.func @transform_5(%arg0: i32) -> (i32, i32) {
    %c0_i32 = arith.constant 0 : i32
    %c0_i32_0 = arith.constant 0 : i32
    %c0_i32_1 = arith.constant 0 : i32
    return %c0_i32, %c0_i32_0 : i32, i32
  }
  func.func @transform_6(%arg0: i32) -> (i32, i32) {
    %c0_i32 = arith.constant 0 : i32
    %c0_i32_0 = arith.constant 0 : i32
    %c0_i32_1 = arith.constant 0 : i32
    return %c0_i32, %c0_i32_0 : i32, i32
  }
  func.func @transform_7(%arg0: i32) -> (i32, i32) {
    %c0_i32 = arith.constant 0 : i32
    %c0_i32_0 = arith.constant 0 : i32
    %c0_i32_1 = arith.constant 0 : i32
    return %c0_i32, %c0_i32_0 : i32, i32
  }
  func.func @transform_8(%arg0: i32) -> (i32, i32) {
    %c0_i32 = arith.constant 0 : i32
    %c0_i32_0 = arith.constant 0 : i32
    %c0_i32_1 = arith.constant 0 : i32
    return %c0_i32, %c0_i32_0 : i32, i32
  }
  func.func @transform_9(%arg0: i32) -> (i32, i32) {
    %c0_i32 = arith.constant 0 : i32
    %c0_i32_0 = arith.constant 0 : i32
    %c0_i32_1 = arith.constant 0 : i32
    return %c0_i32, %c0_i32_0 : i32, i32
  }
  func.func @transform_10(%arg0: i32) -> (i32, i32) {
    %c0_i32 = arith.constant 0 : i32
    %c0_i32_0 = arith.constant 0 : i32
    %c0_i32_1 = arith.constant 0 : i32
    return %c0_i32, %c0_i32_0 : i32, i32
  }
  func.func @transform_11(%arg0: i32) -> (i32, i32) {
    %c0_i32 = arith.constant 0 : i32
    %c0_i32_0 = arith.constant 0 : i32
    %c0_i32_1 = arith.constant 0 : i32
    return %c0_i32, %c0_i32_0 : i32, i32
  }
  func.func @transform_12(%arg0: i32) -> (i32, i32, i32) {
    %c0_i32 = arith.constant 0 : i32
    %c0_i32_0 = arith.constant 0 : i32
    %c0_i32_1 = arith.constant 0 : i32
    return %arg0, %c0_i32, %c0_i32_0 : i32, i32, i32
  }
}

</mosaic_0001>

<llo_original>
// kernel: mpnn_forward.1
$region0: #{mpnn_forward.1}
  #allocation0 [shape = 'u32[]', space=smem, size = 0x4, offset = 0x4, fixed_abs, tag = 'smem constant byte address 0x4 - core index']
  #allocation1 [shape = 'u32[144,128]{1,0:T(1,128)}', space=vmem, size = 0x12000, scoped, tag = 'internal scratch']
  %s0 = inlined_call_operand.vmem [shape: f32[2,8,16], index: 0, kind: input, shape index: {}]
  %s1 = inlined_call_operand.vmem [shape: f32[2,8,8], index: 1, kind: input, shape index: {}]
  %s2 = inlined_call_operand.vmem [shape: f32[2,8,8], index: 2, kind: input, shape index: {}]
  %s3 = inlined_call_operand.vmem [shape: f32[16,16], index: 3, kind: input, shape index: {}]
  %s4 = inlined_call_operand.vmem [shape: f32[16,80], index: 4, kind: input, shape index: {}]
  %s5 = inlined_call_operand.vmem [shape: f32[16,48], index: 5, kind: input, shape index: {}]
  %s6 = inlined_call_operand.vmem [shape: f32[16,16], index: 6, kind: input, shape index: {}]
  %s7 = inlined_call_operand.vmem [shape: f32[16,16], index: 7, kind: input, shape index: {}]
  %s8 = inlined_call_operand.vmem [shape: f32[16,4], index: 8, kind: input, shape index: {}]
  %s9 = inlined_call_operand.vmem [shape: f32[5,16], index: 9, kind: input, shape index: {}]
  %s10 = inlined_call_operand.vmem [shape: f32[3,48], index: 10, kind: input, shape index: {}]
  %s11 = inlined_call_operand.vmem [shape: f32[1,4], index: 11, kind: input, shape index: {}]
  %s12 = inlined_call_operand.vmem [shape: f32[1,2,4], index: 12, kind: output, shape index: {}]
  %s13 = sld [smem:[#allocation0]]
  $region58: #{mpnn_forward.1} parent=0
    _
  %s15 = ssub.s32 1, %s13
  %s16 = scalar_select 0, %s15, %s13
  // Predicated region
  $region2: #{mpnn_forward.1} parent=0 // pred_check
    _
  $region3: #{mpnn_forward.1} parent=0 // pred_check_branch
    %18 = sbr.rel (0) target = $region5
  $region4: #{mpnn_forward.1} parent=0 // pred_region
    _
  $region5: #{mpnn_forward.1} parent=0 // pred_fallthru
    _
  // Predicated region
  $region6: #{mpnn_forward.1} parent=0 // pred_check
    _
  $region7: #{mpnn_forward.1} parent=0 // pred_check_branch
    %20 = sbr.rel (0) target = $region9
  $region8: #{mpnn_forward.1} parent=0 // pred_region
    _
  $region9: #{mpnn_forward.1} parent=0 // pred_fallthru
    _
  // Predicated region
  $region10: #{mpnn_forward.1} parent=0 // pred_check
    _
  $region11: #{mpnn_forward.1} parent=0 // pred_check_branch
    %22 = sbr.rel (0) target = $region13
  $region12: #{mpnn_forward.1} parent=0 // pred_region
    _
  $region13: #{mpnn_forward.1} parent=0 // pred_fallthru
    _
  // Predicated region
  $region14: #{mpnn_forward.1} parent=0 // pred_check
    _
  $region15: #{mpnn_forward.1} parent=0 // pred_check_branch
    %24 = sbr.rel (0) target = $region17
  $region16: #{mpnn_forward.1} parent=0 // pred_region
    _
  $region17: #{mpnn_forward.1} parent=0 // pred_fallthru
    _
  // Predicated region
  $region18: #{mpnn_forward.1} parent=0 // pred_check
    _
  $region19: #{mpnn_forward.1} parent=0 // pred_check_branch
    %26 = sbr.rel (0) target = $region21
  $region20: #{mpnn_forward.1} parent=0 // pred_region
    _
  $region21: #{mpnn_forward.1} parent=0 // pred_fallthru
    _
  // Predicated region
  $region22: #{mpnn_forward.1} parent=0 // pred_check
    _
  $region23: #{mpnn_forward.1} parent=0 // pred_check_branch
    %28 = sbr.rel (0) target = $region25
  $region24: #{mpnn_forward.1} parent=0 // pred_region
    _
  $region25: #{mpnn_forward.1} parent=0 // pred_fallthru
    _
  // Predicated region
  $region26: #{mpnn_forward.1} parent=0 // pred_check
    _
  $region27: #{mpnn_forward.1} parent=0 // pred_check_branch
    %30 = sbr.rel (0) target = $region29
  $region28: #{mpnn_forward.1} parent=0 // pred_region
    _
  $region29: #{mpnn_forward.1} parent=0 // pred_fallthru
    _
  // Predicated region
  $region30: #{mpnn_forward.1} parent=0 // pred_check
    _
  $region31: #{mpnn_forward.1} parent=0 // pred_check_branch
    %32 = sbr.rel (0) target = $region33
  $region32: #{mpnn_forward.1} parent=0 // pred_region
    _
  $region33: #{mpnn_forward.1} parent=0 // pred_fallthru
    _
  // Predicated region
  $region34: #{mpnn_forward.1} parent=0 // pred_check
    _
  $region35: #{mpnn_forward.1} parent=0 // pred_check_branch
    %34 = sbr.rel (0) target = $region37
  $region36: #{mpnn_forward.1} parent=0 // pred_region
    _
  $region37: #{mpnn_forward.1} parent=0 // pred_fallthru
    _
  // Predicated region
  $region38: #{mpnn_forward.1} parent=0 // pred_check
    _
  $region39: #{mpnn_forward.1} parent=0 // pred_check_branch
    %36 = sbr.rel (0) target = $region41
  $region40: #{mpnn_forward.1} parent=0 // pred_region
    _
  $region41: #{mpnn_forward.1} parent=0 // pred_fallthru
    _
  // Predicated region
  $region42: #{mpnn_forward.1} parent=0 // pred_check
    _
  $region43: #{mpnn_forward.1} parent=0 // pred_check_branch
    %38 = sbr.rel (0) target = $region45
  $region44: #{mpnn_forward.1} parent=0 // pred_region
    _
  $region45: #{mpnn_forward.1} parent=0 // pred_fallthru
    _
  // Predicated region
  $region46: #{mpnn_forward.1} parent=0 // pred_check
    _
  $region47: #{mpnn_forward.1} parent=0 // pred_check_branch
    %40 = sbr.rel (0) target = $region49
  $region48: #{mpnn_forward.1} parent=0 // pred_region
    _
  $region49: #{mpnn_forward.1} parent=0 // pred_fallthru
    _
  %v41 = vld [vmem:[%s3] sm:$0xff]
  %v42 = vld [vmem:[%s3 + $0x8] sm:$0xff]
  %v43 = vld [vmem:[%s4] sm:$0xff]
  %v44 = vld [vmem:[%s4 + $0x8] sm:$0xff]
  %v45 = vld [vmem:[%s5] sm:$0xff]
  %v46 = vld [vmem:[%s5 + $0x8] sm:$0xff]
  %v47 = vld [vmem:[%s6] sm:$0xff]
  %v48 = vld [vmem:[%s6 + $0x8] sm:$0xff]
  %v49 = vld [vmem:[%s7] sm:$0xff]
  %v50 = vld [vmem:[%s7 + $0x8] sm:$0xff]
  %v51 = vld [vmem:[%s8] sm:$0xff]
  %v52 = vld [vmem:[%s8 + $0x8] sm:$0xff]
  %v53 = vld [vmem:[%s9] sm:$0x1f]
  %v54 = vld [vmem:[%s10] sm:$0x7]
  %v55 = vld [vmem:[%s11] sm:$0x1]
  %v56 = vld [vmem:[%s0] sm:$0xff]
  %v57 = vld [vmem:[%s0 + $0x8] sm:$0xff]
  %v58 = vld [vmem:[%s1] sm:$0xff]
  %v59 = vld [vmem:[%s1 + $0x8] sm:$0xff]
  %v60 = vld [vmem:[%s2] sm:$0xff]
  %v61 = vld [vmem:[%s2 + $0x8] sm:$0xff]
  %63 = vset.pattern.permute.xlu0 0
  %64 = vperm.xlu0 %63, %v58
  %v65 = vpop.permute.xlu0 %64
  %68 = vset.pattern.permute.xlu0 0
  %69 = vperm.xlu0 %68, %v59
  %v70 = vpop.permute.xlu0 %69
  %v72 = vlaneseq
  %v73 = vshrl.u32 %v72, 7
  %v74 = vsub.s32 1, %v73
  %v75 = vrot.slane %v53, %v74
  %v76 = vmul.f32 %v65, %v75
  %v77 = vmul.f32 %v70, %v75
  %v78 = vlaneseq
  %v79 = vshrl.u32 %v78, 7
  %v80 = vsub.s32 2, %v79
  %v81 = vrot.slane %v53, %v80
  %v82 = vadd.f32 %v76, %v81
  %v83 = vadd.f32 %v77, %v81
  %85 = vset.pattern.permute.xlu0 0
  %86 = vperm.xlu0 %85, %v60
  %v87 = vpop.permute.xlu0 %86
  %90 = vset.pattern.permute.xlu0 0
  %91 = vperm.xlu0 %90, %v61
  %v92 = vpop.permute.xlu0 %91
  %94 = vset.pattern.permute.xlu0 1
  %95 = vperm.xlu0 %94, %v58
  %v96 = vpop.permute.xlu0 %95
  %98 = vset.pattern.permute.xlu0 1
  %99 = vperm.xlu0 %98, %v59
  %v100 = vpop.permute.xlu0 %99
  %v102 = vmul.f32 %v96, %v75
  %v103 = vmul.f32 %v100, %v75
  %v104 = vadd.f32 %v102, %v81
  %v105 = vadd.f32 %v103, %v81
  %106 = vset.pattern.permute.xlu0 1
  %107 = vperm.xlu0 %106, %v60
  %v108 = vpop.permute.xlu0 %107
  %110 = vset.pattern.permute.xlu0 1
  %111 = vperm.xlu0 %110, %v61
  %v112 = vpop.permute.xlu0 %111
  %114 = vset.pattern.permute.xlu0 2
  %115 = vperm.xlu0 %114, %v58
  %v116 = vpop.permute.xlu0 %115
  %118 = vset.pattern.permute.xlu0 2
  %119 = vperm.xlu0 %118, %v59
  %v120 = vpop.permute.xlu0 %119
  %v122 = vmul.f32 %v116, %v75
  %v123 = vmul.f32 %v120, %v75
  %v124 = vadd.f32 %v122, %v81
  %v125 = vadd.f32 %v123, %v81
  %126 = vset.pattern.permute.xlu0 2
  %127 = vperm.xlu0 %126, %v60
  %v128 = vpop.permute.xlu0 %127
  %130 = vset.pattern.permute.xlu0 2
  %131 = vperm.xlu0 %130, %v61
  %v132 = vpop.permute.xlu0 %131
  %134 = vset.pattern.permute.xlu0 3
  %135 = vperm.xlu0 %134, %v58
  %v136 = vpop.permute.xlu0 %135
  %138 = vset.pattern.permute.xlu0 3
  %139 = vperm.xlu0 %138, %v59
  %v140 = vpop.permute.xlu0 %139
  %v142 = vmul.f32 %v136, %v75
  %v143 = vmul.f32 %v140, %v75
  %v144 = vadd.f32 %v142, %v81
  %v145 = vadd.f32 %v143, %v81
  %146 = vset.pattern.permute.xlu0 3
  %147 = vperm.xlu0 %146, %v60
  %v148 = vpop.permute.xlu0 %147
  %150 = vset.pattern.permute.xlu0 3
  %151 = vperm.xlu0 %150, %v61
  %v152 = vpop.permute.xlu0 %151
  %154 = vset.pattern.permute.xlu0 4
  %155 = vperm.xlu0 %154, %v58
  %v156 = vpop.permute.xlu0 %155
  %158 = vset.pattern.permute.xlu0 4
  %159 = vperm.xlu0 %158, %v59
  %v160 = vpop.permute.xlu0 %159
  %v162 = vmul.f32 %v156, %v75
  %v163 = vmul.f32 %v160, %v75
  %v164 = vadd.f32 %v162, %v81
  %v165 = vadd.f32 %v163, %v81
  %166 = vset.pattern.permute.xlu0 4
  %167 = vperm.xlu0 %166, %v60
  %v168 = vpop.permute.xlu0 %167
  %170 = vset.pattern.permute.xlu0 4
  %171 = vperm.xlu0 %170, %v61
  %v172 = vpop.permute.xlu0 %171
  %174 = vset.pattern.permute.xlu0 5
  %175 = vperm.xlu0 %174, %v58
  %v176 = vpop.permute.xlu0 %175
  %178 = vset.pattern.permute.xlu0 5
  %179 = vperm.xlu0 %178, %v59
  %v180 = vpop.permute.xlu0 %179
  %v182 = vmul.f32 %v176, %v75
  %v183 = vmul.f32 %v180, %v75
  %v184 = vadd.f32 %v182, %v81
  %v185 = vadd.f32 %v183, %v81
  %186 = vset.pattern.permute.xlu0 5
  %187 = vperm.xlu0 %186, %v60
  %v188 = vpop.permute.xlu0 %187
  %190 = vset.pattern.permute.xlu0 5
  %191 = vperm.xlu0 %190, %v61
  %v192 = vpop.permute.xlu0 %191
  %194 = vset.pattern.permute.xlu0 6
  %195 = vperm.xlu0 %194, %v58
  %v196 = vpop.permute.xlu0 %195
  %198 = vset.pattern.permute.xlu0 6
  %199 = vperm.xlu0 %198, %v59
  %v200 = vpop.permute.xlu0 %199
  %v202 = vmul.f32 %v196, %v75
  %v203 = vmul.f32 %v200, %v75
  %v204 = vadd.f32 %v202, %v81
  %v205 = vadd.f32 %v203, %v81
  %206 = vset.pattern.permute.xlu0 6
  %207 = vperm.xlu0 %206, %v60
  %v208 = vpop.permute.xlu0 %207
  %210 = vset.pattern.permute.xlu0 6
  %211 = vperm.xlu0 %210, %v61
  %v212 = vpop.permute.xlu0 %211
  %214 = vset.pattern.permute.xlu0 7
  %215 = vperm.xlu0 %214, %v58
  %v216 = vpop.permute.xlu0 %215
  %218 = vset.pattern.permute.xlu0 7
  %219 = vperm.xlu0 %218, %v59
  %v220 = vpop.permute.xlu0 %219
  %v222 = vmul.f32 %v216, %v75
  %v223 = vmul.f32 %v220, %v75
  %v224 = vadd.f32 %v222, %v81
  %v225 = vadd.f32 %v223, %v81
  %226 = vset.pattern.permute.xlu0 7
  %227 = vperm.xlu0 %226, %v60
  %v228 = vpop.permute.xlu0 %227
  %230 = vset.pattern.permute.xlu0 7
  %231 = vperm.xlu0 %230, %v61
  %v232 = vpop.permute.xlu0 %231
  %236 = vrot.lane.b32.xlu0 %v104, 16
  %v237 = vpop.permute.xlu0 %236
  %238 = vrot.lane.b32.xlu0 %v105, 16
  %v239 = vpop.permute.xlu0 %238
  %244 = vrot.lane.b32.xlu0 %v124, 32
  %v245 = vpop.permute.xlu0 %244
  %246 = vrot.lane.b32.xlu0 %v125, 32
  %v247 = vpop.permute.xlu0 %246
  %252 = vrot.lane.b32.xlu0 %v144, 48
  %v253 = vpop.permute.xlu0 %252
  %254 = vrot.lane.b32.xlu0 %v145, 48
  %v255 = vpop.permute.xlu0 %254
  %260 = vrot.lane.b32.xlu0 %v164, 64
  %v261 = vpop.permute.xlu0 %260
  %262 = vrot.lane.b32.xlu0 %v165, 64
  %v263 = vpop.permute.xlu0 %262
  %268 = vrot.lane.b32.xlu0 %v184, 80
  %v269 = vpop.permute.xlu0 %268
  %270 = vrot.lane.b32.xlu0 %v185, 80
  %v271 = vpop.permute.xlu0 %270
  %276 = vrot.lane.b32.xlu0 %v204, 96
  %v277 = vpop.permute.xlu0 %276
  %278 = vrot.lane.b32.xlu0 %v205, 96
  %v279 = vpop.permute.xlu0 %278
  %284 = vrot.lane.b32.xlu0 %v224, 112
  %v285 = vpop.permute.xlu0 %284
  %286 = vrot.lane.b32.xlu0 %v225, 112
  %v287 = vpop.permute.xlu0 %286
  %vm290 = vcmask 130048
  %v291 = vsel %vm290, %v82, %v237
  %v292 = vsel %vm290, %v83, %v239
  %vm293 = vcmask 261120
  %v294 = vsel %vm293, %v291, %v245
  %v295 = vsel %vm293, %v292, %v247
  %vm296 = vcmask 392192
  %v297 = vsel %vm296, %v294, %v253
  %v298 = vsel %vm296, %v295, %v255
  %vm299 = vcmask 523264
  %v300 = vsel %vm299, %v297, %v261
  %v301 = vsel %vm299, %v298, %v263
  %vm302 = vcmask 654336
  %v303 = vsel %vm302, %v300, %v269
  %v304 = vsel %vm302, %v301, %v271
  %vm305 = vcmask 785408
  %v306 = vsel %vm305, %v303, %v277
  %v307 = vsel %vm305, %v304, %v279
  %vm308 = vcmask 916480
  %v309 = vsel %vm308, %v306, %v285
  %v310 = vsel %vm308, %v307, %v287
  %v311 = vsel %vm290, %v87, %v108
  %v312 = vsel %vm290, %v92, %v112
  %v313 = vsel %vm293, %v311, %v128
  %v314 = vsel %vm293, %v312, %v132
  %v315 = vsel %vm296, %v313, %v148
  %v316 = vsel %vm296, %v314, %v152
  %v317 = vsel %vm299, %v315, %v168
  %v318 = vsel %vm299, %v316, %v172
  %v319 = vsel %vm302, %v317, %v188
  %v320 = vsel %vm302, %v318, %v192
  %v321 = vsel %vm305, %v319, %v208
  %v322 = vsel %vm305, %v320, %v212
  %v323 = vsel %vm308, %v321, %v228
  %v324 = vsel %vm308, %v322, %v232
  %vm325 = vcmask 64512
  %v326 = vsel %vm325, %v60, 0.0
  %v327 = vrot.slane %v326, 4
  %v328 = vadd.f32 %v326, %v327
  %v329 = vrot.slane %v328, 2
  %v330 = vadd.f32 %v328, %v329
  %v331 = vrot.slane %v330, 1
  %v332 = vadd.f32 %v330, %v331
  %v333 = vsel %vm325, %v61, 0.0
  %v334 = vrot.slane %v333, 4
  %v335 = vadd.f32 %v333, %v334
  %v336 = vrot.slane %v335, 2
  %v337 = vadd.f32 %v335, %v336
  %v338 = vrot.slane %v337, 1
  %v339 = vadd.f32 %v337, %v338
  %342 = vrot.lane.b32.xlu0 %v332, 127
  %v343 = vpop.permute.xlu0 %342
  %344 = vrot.lane.b32.xlu0 %v339, 127
  %v345 = vpop.permute.xlu0 %344
  %348 = vrot.lane.b32.xlu0 %v332, 126
  %v349 = vpop.permute.xlu0 %348
  %350 = vrot.lane.b32.xlu0 %v339, 126
  %v351 = vpop.permute.xlu0 %350
  %354 = vrot.lane.b32.xlu0 %v332, 125
  %v355 = vpop.permute.xlu0 %354
  %356 = vrot.lane.b32.xlu0 %v339, 125
  %v357 = vpop.permute.xlu0 %356
  %360 = vrot.lane.b32.xlu0 %v332, 124
  %v361 = vpop.permute.xlu0 %360
  %362 = vrot.lane.b32.xlu0 %v339, 124
  %v363 = vpop.permute.xlu0 %362
  %366 = vrot.lane.b32.xlu0 %v332, 123
  %v367 = vpop.permute.xlu0 %366
  %368 = vrot.lane.b32.xlu0 %v339, 123
  %v369 = vpop.permute.xlu0 %368
  %372 = vrot.lane.b32.xlu0 %v332, 122
  %v373 = vpop.permute.xlu0 %372
  %374 = vrot.lane.b32.xlu0 %v339, 122
  %v375 = vpop.permute.xlu0 %374
  %378 = vrot.lane.b32.xlu0 %v332, 121
  %v379 = vpop.permute.xlu0 %378
  %380 = vrot.lane.b32.xlu0 %v339, 121
  %v381 = vpop.permute.xlu0 %380
  %vm384 = vcmask 1040384
  %v385 = vsel %vm384, %v332, %v343
  %v386 = vsel %vm384, %v339, %v345
  %vm387 = vcmask 1041408
  %v388 = vsel %vm387, %v385, %v349
  %v389 = vsel %vm387, %v386, %v351
  %vm390 = vcmask 1042432
  %v391 = vsel %vm390, %v388, %v355
  %v392 = vsel %vm390, %v389, %v357
  %vm393 = vcmask 1043456
  %v394 = vsel %vm393, %v391, %v361
  %v395 = vsel %vm393, %v392, %v363
  %vm396 = vcmask 1044480
  %v397 = vsel %vm396, %v394, %v367
  %v398 = vsel %vm396, %v395, %v369
  %vm399 = vcmask 1045504
  %v400 = vsel %vm399, %v397, %v373
  %v401 = vsel %vm399, %v398, %v375
  %vm402 = vcmask 1046528
  %v403 = vsel %vm402, %v400, %v379
  %v404 = vsel %vm402, %v401, %v381
  %v405 = vlaneseq
  %v406 = vshrl.u32 %v405, 7
  %v407 = vsub.s32 0, %v406
  %v408 = vrot.slane %v53, %v407
  %v410 = vsel %vm290, %v56, 0
  %v413 = vsel %vm290, %v57, 0
  %415 = vmatprep.subr.mxu0 0.0
  %416 = vmatpush1.msra.mxu0 0.0
  %417 = vmatprep.subr.mxu0 0.0
  %418 = vmatpush1.msra.mxu0 0.0
  %419 = vmatprep.subr.mxu0 0.0
  %420 = vmatpush1.msra.mxu0 0.0
  %421 = vmatprep.subr.mxu0 0.0
  %422 = vmatpush1.msra.mxu0 0.0
  %423 = vmatprep.subr.mxu0 0.0
  %424 = vmatpush1.msra.mxu0 0.0
  %425 = vmatprep.subr.mxu0 0.0
  %426 = vmatpush1.msra.mxu0 0.0
  %427 = vmatprep.subr.mxu0 0.0
  %428 = vmatpush1.msra.mxu0 0.0
  %429 = vmatprep.subr.mxu0 0.0
  %430 = vmatpush1.msra.mxu0 0.0
  %431 = vmatprep.subr.mxu0 0.0
  %432 = vmatpush1.msra.mxu0 0.0
  %433 = vmatprep.subr.mxu0 0.0
  %434 = vmatpush1.msra.mxu0 0.0
  %435 = vmatprep.subr.mxu0 0.0
  %436 = vmatpush1.msra.mxu0 0.0
  %437 = vmatprep.subr.mxu0 0.0
  %438 = vmatpush1.msra.mxu0 0.0
  %439 = vmatprep.subr.mxu0 0.0
  %440 = vmatpush1.msra.mxu0 0.0
  %441 = vmatprep.subr.mxu0 0.0
  %442 = vmatpush1.msra.mxu0 0.0
  %443 = vmatprep.subr.mxu0 0.0
  %444 = vmatpush1.msra.mxu0 %v42
  %445 = vmatprep.subr.mxu0 0.0
  %446 = vmatpush1.msra.mxu0 %v41
  %447 = vmatprep.subr.mxu0 0.0
  %448 = vmatpush2.msra.mxu0 0.0
  %449 = vmatprep.subr.mxu0 0.0
  %450 = vmatpush2.msra.mxu0 0.0
  %451 = vmatprep.subr.mxu0 0.0
  %452 = vmatpush2.msra.mxu0 0.0
  %453 = vmatprep.subr.mxu0 0.0
  %454 = vmatpush2.msra.mxu0 0.0
  %455 = vmatprep.subr.mxu0 0.0
  %456 = vmatpush2.msra.mxu0 0.0
  %457 = vmatprep.subr.mxu0 0.0
  %458 = vmatpush2.msra.mxu0 0.0
  %459 = vmatprep.subr.mxu0 0.0
  %460 = vmatpush2.msra.mxu0 0.0
  %461 = vmatprep.subr.mxu0 0.0
  %462 = vmatpush2.msra.mxu0 0.0
  %463 = vmatprep.subr.mxu0 0.0
  %464 = vmatpush2.msra.mxu0 0.0
  %465 = vmatprep.subr.mxu0 0.0
  %466 = vmatpush2.msra.mxu0 0.0
  %467 = vmatprep.subr.mxu0 0.0
  %468 = vmatpush2.msra.mxu0 0.0
  %469 = vmatprep.subr.mxu0 0.0
  %470 = vmatpush2.msra.mxu0 0.0
  %471 = vmatprep.subr.mxu0 0.0
  %472 = vmatpush2.msra.mxu0 0.0
  %473 = vmatprep.subr.mxu0 0.0
  %474 = vmatpush2.msra.mxu0 0.0
  %475 = vmatprep.subr.mxu0 0.0
  %476 = vmatpush2.msra.mxu0 0.0
  %477 = vmatprep.subr.mxu0 0.0
  %478 = vmatpush2.msra.mxu0 0.0
  %479 = vmatprep.mubr.f32.mxu0 0.0
  %480 = vmatmul.mubr.f32.gmra.mxu0 %v410
  %v481 = vpop.f32.mrf.mxu0
  %v482 = vadd.f32 %v408, %v481
  %v483 = vpop.f32.mrf.mxu0
  %484 = vmatprep.mubr.f32.mxu0 0.0
  %485 = vmatmul.mubr.f32.gmra.mxu0 %v413
  %v486 = vpop.f32.mrf.mxu0
  %v487 = vadd.f32 %v408, %v486
  %v488 = vpop.f32.mrf.mxu0
  %489 = vdwg.mxu0
  %v491 = vsel %vm290, %v482, 0
  %v494 = vsel %vm290, %v487, 0
  %496 = vmatprep.subr.mxu0 0.0
  %497 = vmatpush1.msra.mxu0 0.0
  %498 = vmatprep.subr.mxu0 0.0
  %499 = vmatpush1.msra.mxu0 0.0
  %500 = vmatprep.subr.mxu0 0.0
  %501 = vmatpush1.msra.mxu0 0.0
  %502 = vmatprep.subr.mxu0 0.0
  %503 = vmatpush1.msra.mxu0 0.0
  %504 = vmatprep.subr.mxu0 0.0
  %505 = vmatpush1.msra.mxu0 0.0
  %506 = vmatprep.subr.mxu0 0.0
  %507 = vmatpush1.msra.mxu0 0.0
  %508 = vmatprep.subr.mxu0 0.0
  %509 = vmatpush1.msra.mxu0 0.0
  %510 = vmatprep.subr.mxu0 0.0
  %511 = vmatpush1.msra.mxu0 0.0
  %512 = vmatprep.subr.mxu0 0.0
  %513 = vmatpush1.msra.mxu0 0.0
  %514 = vmatprep.subr.mxu0 0.0
  %515 = vmatpush1.msra.mxu0 0.0
  %516 = vmatprep.subr.mxu0 0.0
  %517 = vmatpush1.msra.mxu0 0.0
  %518 = vmatprep.subr.mxu0 0.0
  %519 = vmatpush1.msra.mxu0 0.0
  %520 = vmatprep.subr.mxu0 0.0
  %521 = vmatpush1.msra.mxu0 0.0
  %522 = vmatprep.subr.mxu0 0.0
  %523 = vmatpush1.msra.mxu0 0.0
  %524 = vmatprep.subr.mxu0 0.0
  %525 = vmatpush1.msra.mxu0 %v44
  %526 = vmatprep.subr.mxu0 0.0
  %527 = vmatpush1.msra.mxu0 %v43
  %528 = vmatprep.subr.mxu0 0.0
  %529 = vmatpush2.msra.mxu0 0.0
  %530 = vmatprep.subr.mxu0 0.0
  %531 = vmatpush2.msra.mxu0 0.0
  %532 = vmatprep.subr.mxu0 0.0
  %533 = vmatpush2.msra.mxu0 0.0
  %534 = vmatprep.subr.mxu0 0.0
  %535 = vmatpush2.msra.mxu0 0.0
  %536 = vmatprep.subr.mxu0 0.0
  %537 = vmatpush2.msra.mxu0 0.0
  %538 = vmatprep.subr.mxu0 0.0
  %539 = vmatpush2.msra.mxu0 0.0
  %540 = vmatprep.subr.mxu0 0.0
  %541 = vmatpush2.msra.mxu0 0.0
  %542 = vmatprep.subr.mxu0 0.0
  %543 = vmatpush2.msra.mxu0 0.0
  %544 = vmatprep.subr.mxu0 0.0
  %545 = vmatpush2.msra.mxu0 0.0
  %546 = vmatprep.subr.mxu0 0.0
  %547 = vmatpush2.msra.mxu0 0.0
  %548 = vmatprep.subr.mxu0 0.0
  %549 = vmatpush2.msra.mxu0 0.0
  %550 = vmatprep.subr.mxu0 0.0
  %551 = vmatpush2.msra.mxu0 0.0
  %552 = vmatprep.subr.mxu0 0.0
  %553 = vmatpush2.msra.mxu0 0.0
  %554 = vmatprep.subr.mxu0 0.0
  %555 = vmatpush2.msra.mxu0 0.0
  %556 = vmatprep.subr.mxu0 0.0
  %557 = vmatpush2.msra.mxu0 0.0
  %558 = vmatprep.subr.mxu0 0.0
  %559 = vmatpush2.msra.mxu0 0.0
  %560 = vmatprep.mubr.f32.mxu0 0.0
  %561 = vmatmul.mubr.f32.gmra.mxu0 %v491
  %v562 = vpop.f32.mrf.mxu0
  %v563 = vadd.f32 0.0, %v562
  %v564 = vpop.f32.mrf.mxu0
  %565 = vmatprep.mubr.f32.mxu0 0.0
  %566 = vmatmul.mubr.f32.gmra.mxu0 %v494
  %v567 = vpop.f32.mrf.mxu0
  %v568 = vadd.f32 0.0, %v567
  %v569 = vpop.f32.mrf.mxu0
  %570 = vdwg.mxu0
  %v571 = vlaneseq
  %v572 = vshrl.u32 %v571, 7
  %v573 = vsub.s32 1, %v572
  %v574 = vrot.slane %v54, %v573
  %576 = vrot.lane.b32.xlu0 %v574, 32
  %v577 = vpop.permute.xlu0 %576
  %v579 = vadd.f32 %v563, %v577
  %v580 = vadd.f32 %v568, %v577
  %583 = vrot.lane.b32.xlu0 %v563, 16
  %v584 = vpop.permute.xlu0 %583
  %585 = vrot.lane.b32.xlu0 %v568, 16
  %v586 = vpop.permute.xlu0 %585
  %589 = vrot.lane.b32.xlu0 %v563, 32
  %v590 = vpop.permute.xlu0 %589
  %591 = vrot.lane.b32.xlu0 %v568, 32
  %v592 = vpop.permute.xlu0 %591
  %595 = vrot.lane.b32.xlu0 %v563, 48
  %v596 = vpop.permute.xlu0 %595
  %597 = vrot.lane.b32.xlu0 %v568, 48
  %v598 = vpop.permute.xlu0 %597
  %601 = vrot.lane.b32.xlu0 %v563, 64
  %v602 = vpop.permute.xlu0 %601
  %603 = vrot.lane.b32.xlu0 %v568, 64
  %v604 = vpop.permute.xlu0 %603
  %607 = vrot.lane.b32.xlu0 %v563, 80
  %v608 = vpop.permute.xlu0 %607
  %609 = vrot.lane.b32.xlu0 %v568, 80
  %v610 = vpop.permute.xlu0 %609
  %613 = vrot.lane.b32.xlu0 %v563, 96
  %v614 = vpop.permute.xlu0 %613
  %615 = vrot.lane.b32.xlu0 %v568, 96
  %v616 = vpop.permute.xlu0 %615
  %619 = vrot.lane.b32.xlu0 %v563, 112
  %v620 = vpop.permute.xlu0 %619
  %621 = vrot.lane.b32.xlu0 %v568, 112
  %v622 = vpop.permute.xlu0 %621
  %v625 = vsel %vm290, %v563, %v584
  %v626 = vsel %vm290, %v568, %v586
  %v627 = vsel %vm293, %v625, %v590
  %v628 = vsel %vm293, %v626, %v592
  %v629 = vsel %vm296, %v627, %v596
  %v630 = vsel %vm296, %v628, %v598
  %v631 = vsel %vm299, %v629, %v602
  %v632 = vsel %vm299, %v630, %v604
  %v633 = vsel %vm302, %v631, %v608
  %v634 = vsel %vm302, %v632, %v610
  %v635 = vsel %vm305, %v633, %v614
  %v636 = vsel %vm305, %v634, %v616
  %v637 = vsel %vm308, %v635, %v620
  %v638 = vsel %vm308, %v636, %v622
  %v639 = vrot.slane %v563, 1
  %v640 = vrot.slane %v568, 1
  %v643 = vrot.slane %v563, 2
  %v644 = vrot.slane %v568, 2
  %645 = vrot.lane.b32.xlu0 %v643, 16
  %v646 = vpop.permute.xlu0 %645
  %647 = vrot.lane.b32.xlu0 %v644, 16
  %v648 = vpop.permute.xlu0 %647
  %v651 = vrot.slane %v563, 3
  %v652 = vrot.slane %v568, 3
  %653 = vrot.lane.b32.xlu0 %v651, 32
  %v654 = vpop.permute.xlu0 %653
  %655 = vrot.lane.b32.xlu0 %v652, 32
  %v656 = vpop.permute.xlu0 %655
  %v659 = vrot.slane %v563, 4
  %v660 = vrot.slane %v568, 4
  %661 = vrot.lane.b32.xlu0 %v659, 48
  %v662 = vpop.permute.xlu0 %661
  %663 = vrot.lane.b32.xlu0 %v660, 48
  %v664 = vpop.permute.xlu0 %663
  %v667 = vrot.slane %v563, 5
  %v668 = vrot.slane %v568, 5
  %669 = vrot.lane.b32.xlu0 %v667, 64
  %v670 = vpop.permute.xlu0 %669
  %671 = vrot.lane.b32.xlu0 %v668, 64
  %v672 = vpop.permute.xlu0 %671
  %v675 = vrot.slane %v563, 6
  %v676 = vrot.slane %v568, 6
  %677 = vrot.lane.b32.xlu0 %v675, 80
  %v678 = vpop.permute.xlu0 %677
  %679 = vrot.lane.b32.xlu0 %v676, 80
  %v680 = vpop.permute.xlu0 %679
  %v683 = vrot.slane %v563, 7
  %v684 = vrot.slane %v568, 7
  %685 = vrot.lane.b32.xlu0 %v683, 96
  %v686 = vpop.permute.xlu0 %685
  %687 = vrot.lane.b32.xlu0 %v684, 96
  %v688 = vpop.permute.xlu0 %687
  %v691 = vsel %vm290, %v620, %v639
  %v692 = vsel %vm290, %v622, %v640
  %v693 = vsel %vm293, %v691, %v646
  %v694 = vsel %vm293, %v692, %v648
  %v695 = vsel %vm296, %v693, %v654
  %v696 = vsel %vm296, %v694, %v656
  %v697 = vsel %vm299, %v695, %v662
  %v698 = vsel %vm299, %v696, %v664
  %v699 = vsel %vm302, %v697, %v670
  %v700 = vsel %vm302, %v698, %v672
  %v701 = vsel %vm305, %v699, %v678
  %v702 = vsel %vm305, %v700, %v680
  %v703 = vsel %vm308, %v701, %v686
  %v704 = vsel %vm308, %v702, %v688
  %v705 = vlaneseq
  %v706 = vshrl.u32 %v705, 7
  %v707 = vsub.s32 0, %v706
  %v708 = vrot.slane %v703, %v707
  %v709 = vlaneseq
  %v710 = vshrl.u32 %v709, 7
  %v711 = vsub.s32 0, %v710
  %v712 = vrot.slane %v704, %v711
  %v713 = vadd.f32 %v637, %v708
  %v714 = vadd.f32 %v638, %v712
  %v715 = vadd.f32 %v713, %v309
  %v716 = vadd.f32 %v714, %v310
  %vm717 = vcmp.gt.f32.partialorder %v715, 0.0
  %vm718 = vcmp.gt.f32.partialorder %v716, 0.0
  %v719 = vmin.f32 %v715, 0.0
  %v720 = vmin.f32 %v716, 0.0
  %v721 = vmul.f32 %v719, 1.442695
  %v722 = vpow.pop %v721
  %v723 = vmul.f32 %v720, 1.442695
  %v724 = vpow.pop %v723
  %v725 = vsub.f32 %v722, 1.0
  %v726 = vsub.f32 %v724, 1.0
  %v727 = vmul.f32 %v725, 1.6732632
  %v728 = vmul.f32 %v726, 1.6732632
  %v729 = vsel %vm717, %v715, %v727
  %v730 = vsel %vm718, %v716, %v728
  %v731 = vmul.f32 %v729, 1.050701
  %v732 = vmul.f32 %v730, 1.050701
  %v733 = vmul.f32 %v323, %v731
  %v734 = vmul.f32 %v324, %v732
  %v735 = vrot.slane %v733, 4
  %v736 = vadd.f32 %v733, %v735
  %v737 = vrot.slane %v736, 2
  %v738 = vadd.f32 %v736, %v737
  %v739 = vrot.slane %v738, 1
  %v740 = vadd.f32 %v738, %v739
  %v741 = vrot.slane %v734, 4
  %v742 = vadd.f32 %v734, %v741
  %v743 = vrot.slane %v742, 2
  %v744 = vadd.f32 %v742, %v743
  %v745 = vrot.slane %v744, 1
  %v746 = vadd.f32 %v744, %v745
  %749 = vrot.lane.b32.xlu0 %v740, 112
  %v750 = vpop.permute.xlu0 %749
  %751 = vrot.lane.b32.xlu0 %v746, 112
  %v752 = vpop.permute.xlu0 %751
  %755 = vrot.lane.b32.xlu0 %v740, 96
  %v756 = vpop.permute.xlu0 %755
  %757 = vrot.lane.b32.xlu0 %v746, 96
  %v758 = vpop.permute.xlu0 %757
  %761 = vrot.lane.b32.xlu0 %v740, 80
  %v762 = vpop.permute.xlu0 %761
  %763 = vrot.lane.b32.xlu0 %v746, 80
  %v764 = vpop.permute.xlu0 %763
  %767 = vrot.lane.b32.xlu0 %v740, 64
  %v768 = vpop.permute.xlu0 %767
  %769 = vrot.lane.b32.xlu0 %v746, 64
  %v770 = vpop.permute.xlu0 %769
  %773 = vrot.lane.b32.xlu0 %v740, 48
  %v774 = vpop.permute.xlu0 %773
  %775 = vrot.lane.b32.xlu0 %v746, 48
  %v776 = vpop.permute.xlu0 %775
  %779 = vrot.lane.b32.xlu0 %v740, 32
  %v780 = vpop.permute.xlu0 %779
  %781 = vrot.lane.b32.xlu0 %v746, 32
  %v782 = vpop.permute.xlu0 %781
  %785 = vrot.lane.b32.xlu0 %v740, 16
  %v786 = vpop.permute.xlu0 %785
  %787 = vrot.lane.b32.xlu0 %v746, 16
  %v788 = vpop.permute.xlu0 %787
  %v791 = vsel %vm384, %v740, %v750
  %v792 = vsel %vm384, %v746, %v752
  %v793 = vsel %vm387, %v791, %v756
  %v794 = vsel %vm387, %v792, %v758
  %v795 = vsel %vm390, %v793, %v762
  %v796 = vsel %vm390, %v794, %v764
  %v797 = vsel %vm393, %v795, %v768
  %v798 = vsel %vm393, %v796, %v770
  %v799 = vsel %vm396, %v797, %v774
  %v800 = vsel %vm396, %v798, %v776
  %v801 = vsel %vm399, %v799, %v780
  %v802 = vsel %vm399, %v800, %v782
  %v803 = vsel %vm402, %v801, %v786
  %v804 = vsel %vm402, %v802, %v788
  %806 = vset.pattern.permute.xlu0 0
  %807 = vperm.xlu0 %806, %v403
  %v808 = vpop.permute.xlu0 %807
  %811 = vset.pattern.permute.xlu0 0
  %812 = vperm.xlu0 %811, %v404
  %v813 = vpop.permute.xlu0 %812
  %v815 = vlaneseq
  %v816 = vshrl.u32 %v815, 7
  %v817 = vsub.s32 2, %v816
  %v818 = vrot.slane %v54, %v817
  %v819 = vmul.f32 %v808, %v818
  %v820 = vmul.f32 %v813, %v818
  %v822 = vsel %vm290, %v803, 0
  %v825 = vsel %vm290, %v804, 0
  %827 = vmatprep.subr.mxu0 0.0
  %828 = vmatpush1.msra.mxu0 0.0
  %829 = vmatprep.subr.mxu0 0.0
  %830 = vmatpush1.msra.mxu0 0.0
  %831 = vmatprep.subr.mxu0 0.0
  %832 = vmatpush1.msra.mxu0 0.0
  %833 = vmatprep.subr.mxu0 0.0
  %834 = vmatpush1.msra.mxu0 0.0
  %835 = vmatprep.subr.mxu0 0.0
  %836 = vmatpush1.msra.mxu0 0.0
  %837 = vmatprep.subr.mxu0 0.0
  %838 = vmatpush1.msra.mxu0 0.0
  %839 = vmatprep.subr.mxu0 0.0
  %840 = vmatpush1.msra.mxu0 0.0
  %841 = vmatprep.subr.mxu0 0.0
  %842 = vmatpush1.msra.mxu0 0.0
  %843 = vmatprep.subr.mxu0 0.0
  %844 = vmatpush1.msra.mxu0 0.0
  %845 = vmatprep.subr.mxu0 0.0
  %846 = vmatpush1.msra.mxu0 0.0
  %847 = vmatprep.subr.mxu0 0.0
  %848 = vmatpush1.msra.mxu0 0.0
  %849 = vmatprep.subr.mxu0 0.0
  %850 = vmatpush1.msra.mxu0 0.0
  %851 = vmatprep.subr.mxu0 0.0
  %852 = vmatpush1.msra.mxu0 0.0
  %853 = vmatprep.subr.mxu0 0.0
  %854 = vmatpush1.msra.mxu0 0.0
  %855 = vmatprep.subr.mxu0 0.0
  %856 = vmatpush1.msra.mxu0 %v46
  %857 = vmatprep.subr.mxu0 0.0
  %858 = vmatpush1.msra.mxu0 %v45
  %859 = vmatprep.subr.mxu0 0.0
  %860 = vmatpush2.msra.mxu0 0.0
  %861 = vmatprep.subr.mxu0 0.0
  %862 = vmatpush2.msra.mxu0 0.0
  %863 = vmatprep.subr.mxu0 0.0
  %864 = vmatpush2.msra.mxu0 0.0
  %865 = vmatprep.subr.mxu0 0.0
  %866 = vmatpush2.msra.mxu0 0.0
  %867 = vmatprep.subr.mxu0 0.0
  %868 = vmatpush2.msra.mxu0 0.0
  %869 = vmatprep.subr.mxu0 0.0
  %870 = vmatpush2.msra.mxu0 0.0
  %871 = vmatprep.subr.mxu0 0.0
  %872 = vmatpush2.msra.mxu0 0.0
  %873 = vmatprep.subr.mxu0 0.0
  %874 = vmatpush2.msra.mxu0 0.0
  %875 = vmatprep.subr.mxu0 0.0
  %876 = vmatpush2.msra.mxu0 0.0
  %877 = vmatprep.subr.mxu0 0.0
  %878 = vmatpush2.msra.mxu0 0.0
  %879 = vmatprep.subr.mxu0 0.0
  %880 = vmatpush2.msra.mxu0 0.0
  %881 = vmatprep.subr.mxu0 0.0
  %882 = vmatpush2.msra.mxu0 0.0
  %883 = vmatprep.subr.mxu0 0.0
  %884 = vmatpush2.msra.mxu0 0.0
  %885 = vmatprep.subr.mxu0 0.0
  %886 = vmatpush2.msra.mxu0 0.0
  %887 = vmatprep.subr.mxu0 0.0
  %888 = vmatpush2.msra.mxu0 0.0
  %889 = vmatprep.subr.mxu0 0.0
  %890 = vmatpush2.msra.mxu0 0.0
  %891 = vmatprep.mubr.f32.mxu0 0.0
  %892 = vmatmul.mubr.f32.gmra.mxu0 %v822
  %v893 = vpop.f32.mrf.mxu0
  %v894 = vadd.f32 %v819, %v893
  %v895 = vpop.f32.mrf.mxu0
  %896 = vmatprep.mubr.f32.mxu0 0.0
  %897 = vmatmul.mubr.f32.gmra.mxu0 %v825
  %v898 = vpop.f32.mrf.mxu0
  %v899 = vadd.f32 %v820, %v898
  %v900 = vpop.f32.mrf.mxu0
  %901 = vdwg.mxu0
  %v902 = vlaneseq
  %v903 = vshrl.u32 %v902, 7
  %v904 = vsub.s32 0, %v903
  %v905 = vrot.slane %v54, %v904
  %v906 = vadd.f32 %v894, %v905
  %v907 = vadd.f32 %v899, %v905
  %910 = vrot.lane.b32.xlu0 %v579, 96
  %v911 = vpop.permute.xlu0 %910
  %912 = vrot.lane.b32.xlu0 %v580, 96
  %v913 = vpop.permute.xlu0 %912
  %v916 = vadd.f32 %v906, %v911
  %v917 = vadd.f32 %v907, %v913
  %v918 = vxor.u32 %v916, 2147483648
  %v919 = vxor.u32 %v917, 2147483648
  %v920 = vmul.f32 %v918, 1.442695
  %v921 = vpow.pop %v920
  %v922 = vmul.f32 %v919, 1.442695
  %v923 = vpow.pop %v922
  %v924 = vadd.f32 %v921, 1.0
  %v925 = vadd.f32 %v923, 1.0
  %v926 = vrcp.pop %v924
  %v927 = vmul.f32 1.0, %v926
  %v928 = vrcp.pop %v925
  %v929 = vmul.f32 1.0, %v928
  %930 = vrot.lane.b32.xlu0 %v579, 64
  %v931 = vpop.permute.xlu0 %930
  %932 = vrot.lane.b32.xlu0 %v580, 64
  %v933 = vpop.permute.xlu0 %932
  %v936 = vmul.f32 %v927, %v931
  %v937 = vmul.f32 %v929, %v933
  %940 = vrot.lane.b32.xlu0 %v936, 32
  %v941 = vpop.permute.xlu0 %940
  %942 = vrot.lane.b32.xlu0 %v937, 32
  %v943 = vpop.permute.xlu0 %942
  %v946 = vadd.f32 %v906, %v941
  %v947 = vadd.f32 %v907, %v943
  %v948 = vtanh.pop %v946
  %v949 = vtanh.pop %v947
  %v950 = vsub.f32 1.0, %v927
  %v951 = vsub.f32 1.0, %v929
  %954 = vrot.lane.b32.xlu0 %v948, 112
  %v955 = vpop.permute.xlu0 %954
  %956 = vrot.lane.b32.xlu0 %v949, 112
  %v957 = vpop.permute.xlu0 %956
  %v960 = vmul.f32 %v950, %v955
  %v961 = vmul.f32 %v951, %v957
  %962 = vrot.lane.b32.xlu0 %v482, 16
  %v963 = vpop.permute.xlu0 %962
  %964 = vrot.lane.b32.xlu0 %v487, 16
  %v965 = vpop.permute.xlu0 %964
  %v968 = vmul.f32 %v927, %v963
  %v969 = vmul.f32 %v929, %v965
  %v970 = vadd.f32 %v960, %v968
  %v971 = vadd.f32 %v961, %v969
  %974 = vrot.lane.b32.xlu0 %v970, 112
  %v975 = vpop.permute.xlu0 %974
  %976 = vrot.lane.b32.xlu0 %v971, 112
  %v977 = vpop.permute.xlu0 %976
  %v978 = vsel %vm290, %v975, 0
  %v980 = vsel %vm290, %v977, 0
  %982 = vmatprep.subr.mxu0 0.0
  %983 = vmatpush1.msra.mxu0 0.0
  %984 = vmatprep.subr.mxu0 0.0
  %985 = vmatpush1.msra.mxu0 0.0
  %986 = vmatprep.subr.mxu0 0.0
  %987 = vmatpush1.msra.mxu0 0.0
  %988 = vmatprep.subr.mxu0 0.0
  %989 = vmatpush1.msra.mxu0 0.0
  %990 = vmatprep.subr.mxu0 0.0
  %991 = vmatpush1.msra.mxu0 0.0
  %992 = vmatprep.subr.mxu0 0.0
  %993 = vmatpush1.msra.mxu0 0.0
  %994 = vmatprep.subr.mxu0 0.0
  %995 = vmatpush1.msra.mxu0 0.0
  %996 = vmatprep.subr.mxu0 0.0
  %997 = vmatpush1.msra.mxu0 0.0
  %998 = vmatprep.subr.mxu0 0.0
  %999 = vmatpush1.msra.mxu0 0.0
  %1000 = vmatprep.subr.mxu0 0.0
  %1001 = vmatpush1.msra.mxu0 0.0
  %1002 = vmatprep.subr.mxu0 0.0
  %1003 = vmatpush1.msra.mxu0 0.0
  %1004 = vmatprep.subr.mxu0 0.0
  %1005 = vmatpush1.msra.mxu0 0.0
  %1006 = vmatprep.subr.mxu0 0.0
  %1007 = vmatpush1.msra.mxu0 0.0
  %1008 = vmatprep.subr.mxu0 0.0
  %1009 = vmatpush1.msra.mxu0 0.0
  %1010 = vmatprep.subr.mxu0 0.0
  %1011 = vmatpush1.msra.mxu0 %v44
  %1012 = vmatprep.subr.mxu0 0.0
  %1013 = vmatpush1.msra.mxu0 %v43
  %1014 = vmatprep.subr.mxu0 0.0
  %1015 = vmatpush2.msra.mxu0 0.0
  %1016 = vmatprep.subr.mxu0 0.0
  %1017 = vmatpush2.msra.mxu0 0.0
  %1018 = vmatprep.subr.mxu0 0.0
  %1019 = vmatpush2.msra.mxu0 0.0
  %1020 = vmatprep.subr.mxu0 0.0
  %1021 = vmatpush2.msra.mxu0 0.0
  %1022 = vmatprep.subr.mxu0 0.0
  %1023 = vmatpush2.msra.mxu0 0.0
  %1024 = vmatprep.subr.mxu0 0.0
  %1025 = vmatpush2.msra.mxu0 0.0
  %1026 = vmatprep.subr.mxu0 0.0
  %1027 = vmatpush2.msra.mxu0 0.0
  %1028 = vmatprep.subr.mxu0 0.0
  %1029 = vmatpush2.msra.mxu0 0.0
  %1030 = vmatprep.subr.mxu0 0.0
  %1031 = vmatpush2.msra.mxu0 0.0
  %1032 = vmatprep.subr.mxu0 0.0
  %1033 = vmatpush2.msra.mxu0 0.0
  %1034 = vmatprep.subr.mxu0 0.0
  %1035 = vmatpush2.msra.mxu0 0.0
  %1036 = vmatprep.subr.mxu0 0.0
  %1037 = vmatpush2.msra.mxu0 0.0
  %1038 = vmatprep.subr.mxu0 0.0
  %1039 = vmatpush2.msra.mxu0 0.0
  %1040 = vmatprep.subr.mxu0 0.0
  %1041 = vmatpush2.msra.mxu0 0.0
  %1042 = vmatprep.subr.mxu0 0.0
  %1043 = vmatpush2.msra.mxu0 0.0
  %1044 = vmatprep.subr.mxu0 0.0
  %1045 = vmatpush2.msra.mxu0 0.0
  %1046 = vmatprep.mubr.f32.mxu0 0.0
  %1047 = vmatmul.mubr.f32.gmra.mxu0 %v978
  %v1048 = vpop.f32.mrf.mxu0
  %v1049 = vadd.f32 0.0, %v1048
  %v1050 = vpop.f32.mrf.mxu0
  %1051 = vmatprep.mubr.f32.mxu0 0.0
  %1052 = vmatmul.mubr.f32.gmra.mxu0 %v980
  %v1053 = vpop.f32.mrf.mxu0
  %v1054 = vadd.f32 0.0, %v1053
  %v1055 = vpop.f32.mrf.mxu0
  %1056 = vdwg.mxu0
  %v1057 = vadd.f32 %v1049, %v577
  %v1058 = vadd.f32 %v1054, %v577
  %1061 = vrot.lane.b32.xlu0 %v1049, 16
  %v1062 = vpop.permute.xlu0 %1061
  %1063 = vrot.lane.b32.xlu0 %v1054, 16
  %v1064 = vpop.permute.xlu0 %1063
  %1067 = vrot.lane.b32.xlu0 %v1049, 32
  %v1068 = vpop.permute.xlu0 %1067
  %1069 = vrot.lane.b32.xlu0 %v1054, 32
  %v1070 = vpop.permute.xlu0 %1069
  %1073 = vrot.lane.b32.xlu0 %v1049, 48
  %v1074 = vpop.permute.xlu0 %1073
  %1075 = vrot.lane.b32.xlu0 %v1054, 48
  %v1076 = vpop.permute.xlu0 %1075
  %1079 = vrot.lane.b32.xlu0 %v1049, 64
  %v1080 = vpop.permute.xlu0 %1079
  %1081 = vrot.lane.b32.xlu0 %v1054, 64
  %v1082 = vpop.permute.xlu0 %1081
  %1085 = vrot.lane.b32.xlu0 %v1049, 80
  %v1086 = vpop.permute.xlu0 %1085
  %1087 = vrot.lane.b32.xlu0 %v1054, 80
  %v1088 = vpop.permute.xlu0 %1087
  %1091 = vrot.lane.b32.xlu0 %v1049, 96
  %v1092 = vpop.permute.xlu0 %1091
  %1093 = vrot.lane.b32.xlu0 %v1054, 96
  %v1094 = vpop.permute.xlu0 %1093
  %1097 = vrot.lane.b32.xlu0 %v1049, 112
  %v1098 = vpop.permute.xlu0 %1097
  %1099 = vrot.lane.b32.xlu0 %v1054, 112
  %v1100 = vpop.permute.xlu0 %1099
  %v1103 = vsel %vm290, %v1049, %v1062
  %v1104 = vsel %vm290, %v1054, %v1064
  %v1105 = vsel %vm293, %v1103, %v1068
  %v1106 = vsel %vm293, %v1104, %v1070
  %v1107 = vsel %vm296, %v1105, %v1074
  %v1108 = vsel %vm296, %v1106, %v1076
  %v1109 = vsel %vm299, %v1107, %v1080
  %v1110 = vsel %vm299, %v1108, %v1082
  %v1111 = vsel %vm302, %v1109, %v1086
  %v1112 = vsel %vm302, %v1110, %v1088
  %v1113 = vsel %vm305, %v1111, %v1092
  %v1114 = vsel %vm305, %v1112, %v1094
  %v1115 = vsel %vm308, %v1113, %v1098
  %v1116 = vsel %vm308, %v1114, %v1100
  %v1117 = vrot.slane %v1049, 1
  %v1118 = vrot.slane %v1054, 1
  %v1121 = vrot.slane %v1049, 2
  %v1122 = vrot.slane %v1054, 2
  %1123 = vrot.lane.b32.xlu0 %v1121, 16
  %v1124 = vpop.permute.xlu0 %1123
  %1125 = vrot.lane.b32.xlu0 %v1122, 16
  %v1126 = vpop.permute.xlu0 %1125
  %v1129 = vrot.slane %v1049, 3
  %v1130 = vrot.slane %v1054, 3
  %1131 = vrot.lane.b32.xlu0 %v1129, 32
  %v1132 = vpop.permute.xlu0 %1131
  %1133 = vrot.lane.b32.xlu0 %v1130, 32
  %v1134 = vpop.permute.xlu0 %1133
  %v1137 = vrot.slane %v1049, 4
  %v1138 = vrot.slane %v1054, 4
  %1139 = vrot.lane.b32.xlu0 %v1137, 48
  %v1140 = vpop.permute.xlu0 %1139
  %1141 = vrot.lane.b32.xlu0 %v1138, 48
  %v1142 = vpop.permute.xlu0 %1141
  %v1145 = vrot.slane %v1049, 5
  %v1146 = vrot.slane %v1054, 5
  %1147 = vrot.lane.b32.xlu0 %v1145, 64
  %v1148 = vpop.permute.xlu0 %1147
  %1149 = vrot.lane.b32.xlu0 %v1146, 64
  %v1150 = vpop.permute.xlu0 %1149
  %v1153 = vrot.slane %v1049, 6
  %v1154 = vrot.slane %v1054, 6
  %1155 = vrot.lane.b32.xlu0 %v1153, 80
  %v1156 = vpop.permute.xlu0 %1155
  %1157 = vrot.lane.b32.xlu0 %v1154, 80
  %v1158 = vpop.permute.xlu0 %1157
  %v1161 = vrot.slane %v1049, 7
  %v1162 = vrot.slane %v1054, 7
  %1163 = vrot.lane.b32.xlu0 %v1161, 96
  %v1164 = vpop.permute.xlu0 %1163
  %1165 = vrot.lane.b32.xlu0 %v1162, 96
  %v1166 = vpop.permute.xlu0 %1165
  %v1169 = vsel %vm290, %v1098, %v1117
  %v1170 = vsel %vm290, %v1100, %v1118
  %v1171 = vsel %vm293, %v1169, %v1124
  %v1172 = vsel %vm293, %v1170, %v1126
  %v1173 = vsel %vm296, %v1171, %v1132
  %v1174 = vsel %vm296, %v1172, %v1134
  %v1175 = vsel %vm299, %v1173, %v1140
  %v1176 = vsel %vm299, %v1174, %v1142
  %v1177 = vsel %vm302, %v1175, %v1148
  %v1178 = vsel %vm302, %v1176, %v1150
  %v1179 = vsel %vm305, %v1177, %v1156
  %v1180 = vsel %vm305, %v1178, %v1158
  %v1181 = vsel %vm308, %v1179, %v1164
  %v1182 = vsel %vm308, %v1180, %v1166
  %v1183 = vlaneseq
  %v1184 = vshrl.u32 %v1183, 7
  %v1185 = vsub.s32 0, %v1184
  %v1186 = vrot.slane %v1181, %v1185
  %v1187 = vlaneseq
  %v1188 = vshrl.u32 %v1187, 7
  %v1189 = vsub.s32 0, %v1188
  %v1190 = vrot.slane %v1182, %v1189
  %v1191 = vadd.f32 %v1115, %v1186
  %v1192 = vadd.f32 %v1116, %v1190
  %v1193 = vadd.f32 %v1191, %v309
  %v1194 = vadd.f32 %v1192, %v310
  %vm1195 = vcmp.gt.f32.partialorder %v1193, 0.0
  %vm1196 = vcmp.gt.f32.partialorder %v1194, 0.0
  %v1197 = vmin.f32 %v1193, 0.0
  %v1198 = vmin.f32 %v1194, 0.0
  %v1199 = vmul.f32 %v1197, 1.442695
  %v1200 = vpow.pop %v1199
  %v1201 = vmul.f32 %v1198, 1.442695
  %v1202 = vpow.pop %v1201
  %v1203 = vsub.f32 %v1200, 1.0
  %v1204 = vsub.f32 %v1202, 1.0
  %v1205 = vmul.f32 %v1203, 1.6732632
  %v1206 = vmul.f32 %v1204, 1.6732632
  %v1207 = vsel %vm1195, %v1193, %v1205
  %v1208 = vsel %vm1196, %v1194, %v1206
  %v1209 = vmul.f32 %v1207, 1.050701
  %v1210 = vmul.f32 %v1208, 1.050701
  %v1211 = vmul.f32 %v323, %v1209
  %v1212 = vmul.f32 %v324, %v1210
  %v1213 = vrot.slane %v1211, 4
  %v1214 = vadd.f32 %v1211, %v1213
  %v1215 = vrot.slane %v1214, 2
  %v1216 = vadd.f32 %v1214, %v1215
  %v1217 = vrot.slane %v1216, 1
  %v1218 = vadd.f32 %v1216, %v1217
  %v1219 = vrot.slane %v1212, 4
  %v1220 = vadd.f32 %v1212, %v1219
  %v1221 = vrot.slane %v1220, 2
  %v1222 = vadd.f32 %v1220, %v1221
  %v1223 = vrot.slane %v1222, 1
  %v1224 = vadd.f32 %v1222, %v1223
  %1227 = vrot.lane.b32.xlu0 %v1218, 112
  %v1228 = vpop.permute.xlu0 %1227
  %1229 = vrot.lane.b32.xlu0 %v1224, 112
  %v1230 = vpop.permute.xlu0 %1229
  %1233 = vrot.lane.b32.xlu0 %v1218, 96
  %v1234 = vpop.permute.xlu0 %1233
  %1235 = vrot.lane.b32.xlu0 %v1224, 96
  %v1236 = vpop.permute.xlu0 %1235
  %1239 = vrot.lane.b32.xlu0 %v1218, 80
  %v1240 = vpop.permute.xlu0 %1239
  %1241 = vrot.lane.b32.xlu0 %v1224, 80
  %v1242 = vpop.permute.xlu0 %1241
  %1245 = vrot.lane.b32.xlu0 %v1218, 64
  %v1246 = vpop.permute.xlu0 %1245
  %1247 = vrot.lane.b32.xlu0 %v1224, 64
  %v1248 = vpop.permute.xlu0 %1247
  %1251 = vrot.lane.b32.xlu0 %v1218, 48
  %v1252 = vpop.permute.xlu0 %1251
  %1253 = vrot.lane.b32.xlu0 %v1224, 48
  %v1254 = vpop.permute.xlu0 %1253
  %1257 = vrot.lane.b32.xlu0 %v1218, 32
  %v1258 = vpop.permute.xlu0 %1257
  %1259 = vrot.lane.b32.xlu0 %v1224, 32
  %v1260 = vpop.permute.xlu0 %1259
  %1263 = vrot.lane.b32.xlu0 %v1218, 16
  %v1264 = vpop.permute.xlu0 %1263
  %1265 = vrot.lane.b32.xlu0 %v1224, 16
  %v1266 = vpop.permute.xlu0 %1265
  %v1269 = vsel %vm384, %v1218, %v1228
  %v1270 = vsel %vm384, %v1224, %v1230
  %v1271 = vsel %vm387, %v1269, %v1234
  %v1272 = vsel %vm387, %v1270, %v1236
  %v1273 = vsel %vm390, %v1271, %v1240
  %v1274 = vsel %vm390, %v1272, %v1242
  %v1275 = vsel %vm393, %v1273, %v1246
  %v1276 = vsel %vm393, %v1274, %v1248
  %v1277 = vsel %vm396, %v1275, %v1252
  %v1278 = vsel %vm396, %v1276, %v1254
  %v1279 = vsel %vm399, %v1277, %v1258
  %v1280 = vsel %vm399, %v1278, %v1260
  %v1281 = vsel %vm402, %v1279, %v1264
  %v1282 = vsel %vm402, %v1280, %v1266
  %v1284 = vsel %vm290, %v1281, 0
  %v1287 = vsel %vm290, %v1282, 0
  %1289 = vmatprep.subr.mxu0 0.0
  %1290 = vmatpush1.msra.mxu0 0.0
  %1291 = vmatprep.subr.mxu0 0.0
  %1292 = vmatpush1.msra.mxu0 0.0
  %1293 = vmatprep.subr.mxu0 0.0
  %1294 = vmatpush1.msra.mxu0 0.0
  %1295 = vmatprep.subr.mxu0 0.0
  %1296 = vmatpush1.msra.mxu0 0.0
  %1297 = vmatprep.subr.mxu0 0.0
  %1298 = vmatpush1.msra.mxu0 0.0
  %1299 = vmatprep.subr.mxu0 0.0
  %1300 = vmatpush1.msra.mxu0 0.0
  %1301 = vmatprep.subr.mxu0 0.0
  %1302 = vmatpush1.msra.mxu0 0.0
  %1303 = vmatprep.subr.mxu0 0.0
  %1304 = vmatpush1.msra.mxu0 0.0
  %1305 = vmatprep.subr.mxu0 0.0
  %1306 = vmatpush1.msra.mxu0 0.0
  %1307 = vmatprep.subr.mxu0 0.0
  %1308 = vmatpush1.msra.mxu0 0.0
  %1309 = vmatprep.subr.mxu0 0.0
  %1310 = vmatpush1.msra.mxu0 0.0
  %1311 = vmatprep.subr.mxu0 0.0
  %1312 = vmatpush1.msra.mxu0 0.0
  %1313 = vmatprep.subr.mxu0 0.0
  %1314 = vmatpush1.msra.mxu0 0.0
  %1315 = vmatprep.subr.mxu0 0.0
  %1316 = vmatpush1.msra.mxu0 0.0
  %1317 = vmatprep.subr.mxu0 0.0
  %1318 = vmatpush1.msra.mxu0 %v46
  %1319 = vmatprep.subr.mxu0 0.0
  %1320 = vmatpush1.msra.mxu0 %v45
  %1321 = vmatprep.subr.mxu0 0.0
  %1322 = vmatpush2.msra.mxu0 0.0
  %1323 = vmatprep.subr.mxu0 0.0
  %1324 = vmatpush2.msra.mxu0 0.0
  %1325 = vmatprep.subr.mxu0 0.0
  %1326 = vmatpush2.msra.mxu0 0.0
  %1327 = vmatprep.subr.mxu0 0.0
  %1328 = vmatpush2.msra.mxu0 0.0
  %1329 = vmatprep.subr.mxu0 0.0
  %1330 = vmatpush2.msra.mxu0 0.0
  %1331 = vmatprep.subr.mxu0 0.0
  %1332 = vmatpush2.msra.mxu0 0.0
  %1333 = vmatprep.subr.mxu0 0.0
  %1334 = vmatpush2.msra.mxu0 0.0
  %1335 = vmatprep.subr.mxu0 0.0
  %1336 = vmatpush2.msra.mxu0 0.0
  %1337 = vmatprep.subr.mxu0 0.0
  %1338 = vmatpush2.msra.mxu0 0.0
  %1339 = vmatprep.subr.mxu0 0.0
  %1340 = vmatpush2.msra.mxu0 0.0
  %1341 = vmatprep.subr.mxu0 0.0
  %1342 = vmatpush2.msra.mxu0 0.0
  %1343 = vmatprep.subr.mxu0 0.0
  %1344 = vmatpush2.msra.mxu0 0.0
  %1345 = vmatprep.subr.mxu0 0.0
  %1346 = vmatpush2.msra.mxu0 0.0
  %1347 = vmatprep.subr.mxu0 0.0
  %1348 = vmatpush2.msra.mxu0 0.0
  %1349 = vmatprep.subr.mxu0 0.0
  %1350 = vmatpush2.msra.mxu0 0.0
  %1351 = vmatprep.subr.mxu0 0.0
  %1352 = vmatpush2.msra.mxu0 0.0
  %1353 = vmatprep.mubr.f32.mxu0 0.0
  %1354 = vmatmul.mubr.f32.gmra.mxu0 %v1284
  %v1355 = vpop.f32.mrf.mxu0
  %v1356 = vadd.f32 %v819, %v1355
  %v1357 = vpop.f32.mrf.mxu0
  %1358 = vmatprep.mubr.f32.mxu0 0.0
  %1359 = vmatmul.mubr.f32.gmra.mxu0 %v1287
  %v1360 = vpop.f32.mrf.mxu0
  %v1361 = vadd.f32 %v820, %v1360
  %v1362 = vpop.f32.mrf.mxu0
  %1363 = vdwg.mxu0
  %v1364 = vadd.f32 %v1356, %v905
  %v1365 = vadd.f32 %v1361, %v905
  %1368 = vrot.lane.b32.xlu0 %v1057, 96
  %v1369 = vpop.permute.xlu0 %1368
  %1370 = vrot.lane.b32.xlu0 %v1058, 96
  %v1371 = vpop.permute.xlu0 %1370
  %v1374 = vadd.f32 %v1364, %v1369
  %v1375 = vadd.f32 %v1365, %v1371
  %v1376 = vxor.u32 %v1374, 2147483648
  %v1377 = vxor.u32 %v1375, 2147483648
  %v1378 = vmul.f32 %v1376, 1.442695
  %v1379 = vpow.pop %v1378
  %v1380 = vmul.f32 %v1377, 1.442695
  %v1381 = vpow.pop %v1380
  %v1382 = vadd.f32 %v1379, 1.0
  %v1383 = vadd.f32 %v1381, 1.0
  %v1384 = vrcp.pop %v1382
  %v1385 = vmul.f32 1.0, %v1384
  %v1386 = vrcp.pop %v1383
  %v1387 = vmul.f32 1.0, %v1386
  %1388 = vrot.lane.b32.xlu0 %v1057, 64
  %v1389 = vpop.permute.xlu0 %1388
  %1390 = vrot.lane.b32.xlu0 %v1058, 64
  %v1391 = vpop.permute.xlu0 %1390
  %v1394 = vmul.f32 %v1385, %v1389
  %v1395 = vmul.f32 %v1387, %v1391
  %1398 = vrot.lane.b32.xlu0 %v1394, 32
  %v1399 = vpop.permute.xlu0 %1398
  %1400 = vrot.lane.b32.xlu0 %v1395, 32
  %v1401 = vpop.permute.xlu0 %1400
  %v1404 = vadd.f32 %v1364, %v1399
  %v1405 = vadd.f32 %v1365, %v1401
  %v1406 = vtanh.pop %v1404
  %v1407 = vtanh.pop %v1405
  %v1408 = vsub.f32 1.0, %v1385
  %v1409 = vsub.f32 1.0, %v1387
  %1412 = vrot.lane.b32.xlu0 %v1406, 112
  %v1413 = vpop.permute.xlu0 %1412
  %1414 = vrot.lane.b32.xlu0 %v1407, 112
  %v1415 = vpop.permute.xlu0 %1414
  %v1418 = vmul.f32 %v1408, %v1413
  %v1419 = vmul.f32 %v1409, %v1415
  %v1420 = vmul.f32 %v1385, %v970
  %v1421 = vmul.f32 %v1387, %v971
  %v1422 = vadd.f32 %v1418, %v1420
  %v1423 = vadd.f32 %v1419, %v1421
  %1426 = vrot.lane.b32.xlu0 %v1422, 112
  %v1427 = vpop.permute.xlu0 %1426
  %1428 = vrot.lane.b32.xlu0 %v1423, 112
  %v1429 = vpop.permute.xlu0 %1428
  %v1430 = vsel %vm290, %v1427, 0
  %v1432 = vsel %vm290, %v1429, 0
  %1434 = vmatprep.subr.mxu0 0.0
  %1435 = vmatpush1.msra.mxu0 0.0
  %1436 = vmatprep.subr.mxu0 0.0
  %1437 = vmatpush1.msra.mxu0 0.0
  %1438 = vmatprep.subr.mxu0 0.0
  %1439 = vmatpush1.msra.mxu0 0.0
  %1440 = vmatprep.subr.mxu0 0.0
  %1441 = vmatpush1.msra.mxu0 0.0
  %1442 = vmatprep.subr.mxu0 0.0
  %1443 = vmatpush1.msra.mxu0 0.0
  %1444 = vmatprep.subr.mxu0 0.0
  %1445 = vmatpush1.msra.mxu0 0.0
  %1446 = vmatprep.subr.mxu0 0.0
  %1447 = vmatpush1.msra.mxu0 0.0
  %1448 = vmatprep.subr.mxu0 0.0
  %1449 = vmatpush1.msra.mxu0 0.0
  %1450 = vmatprep.subr.mxu0 0.0
  %1451 = vmatpush1.msra.mxu0 0.0
  %1452 = vmatprep.subr.mxu0 0.0
  %1453 = vmatpush1.msra.mxu0 0.0
  %1454 = vmatprep.subr.mxu0 0.0
  %1455 = vmatpush1.msra.mxu0 0.0
  %1456 = vmatprep.subr.mxu0 0.0
  %1457 = vmatpush1.msra.mxu0 0.0
  %1458 = vmatprep.subr.mxu0 0.0
  %1459 = vmatpush1.msra.mxu0 0.0
  %1460 = vmatprep.subr.mxu0 0.0
  %1461 = vmatpush1.msra.mxu0 0.0
  %1462 = vmatprep.subr.mxu0 0.0
  %1463 = vmatpush1.msra.mxu0 %v44
  %1464 = vmatprep.subr.mxu0 0.0
  %1465 = vmatpush1.msra.mxu0 %v43
  %1466 = vmatprep.subr.mxu0 0.0
  %1467 = vmatpush2.msra.mxu0 0.0
  %1468 = vmatprep.subr.mxu0 0.0
  %1469 = vmatpush2.msra.mxu0 0.0
  %1470 = vmatprep.subr.mxu0 0.0
  %1471 = vmatpush2.msra.mxu0 0.0
  %1472 = vmatprep.subr.mxu0 0.0
  %1473 = vmatpush2.msra.mxu0 0.0
  %1474 = vmatprep.subr.mxu0 0.0
  %1475 = vmatpush2.msra.mxu0 0.0
  %1476 = vmatprep.subr.mxu0 0.0
  %1477 = vmatpush2.msra.mxu0 0.0
  %1478 = vmatprep.subr.mxu0 0.0
  %1479 = vmatpush2.msra.mxu0 0.0
  %1480 = vmatprep.subr.mxu0 0.0
  %1481 = vmatpush2.msra.mxu0 0.0
  %1482 = vmatprep.subr.mxu0 0.0
  %1483 = vmatpush2.msra.mxu0 0.0
  %1484 = vmatprep.subr.mxu0 0.0
  %1485 = vmatpush2.msra.mxu0 0.0
  %1486 = vmatprep.subr.mxu0 0.0
  %1487 = vmatpush2.msra.mxu0 0.0
  %1488 = vmatprep.subr.mxu0 0.0
  %1489 = vmatpush2.msra.mxu0 0.0
  %1490 = vmatprep.subr.mxu0 0.0
  %1491 = vmatpush2.msra.mxu0 0.0
  %1492 = vmatprep.subr.mxu0 0.0
  %1493 = vmatpush2.msra.mxu0 0.0
  %1494 = vmatprep.subr.mxu0 0.0
  %1495 = vmatpush2.msra.mxu0 0.0
  %1496 = vmatprep.subr.mxu0 0.0
  %1497 = vmatpush2.msra.mxu0 0.0
  %1498 = vmatprep.mubr.f32.mxu0 0.0
  %1499 = vmatmul.mubr.f32.gmra.mxu0 %v1430
  %v1500 = vpop.f32.mrf.mxu0
  %v1501 = vadd.f32 0.0, %v1500
  %v1502 = vpop.f32.mrf.mxu0
  %1503 = vmatprep.mubr.f32.mxu0 0.0
  %1504 = vmatmul.mubr.f32.gmra.mxu0 %v1432
  %v1505 = vpop.f32.mrf.mxu0
  %v1506 = vadd.f32 0.0, %v1505
  %v1507 = vpop.f32.mrf.mxu0
  %1508 = vdwg.mxu0
  %v1509 = vadd.f32 %v1501, %v577
  %v1510 = vadd.f32 %v1506, %v577
  %1513 = vrot.lane.b32.xlu0 %v1501, 16
  %v1514 = vpop.permute.xlu0 %1513
  %1515 = vrot.lane.b32.xlu0 %v1506, 16
  %v1516 = vpop.permute.xlu0 %1515
  %1519 = vrot.lane.b32.xlu0 %v1501, 32
  %v1520 = vpop.permute.xlu0 %1519
  %1521 = vrot.lane.b32.xlu0 %v1506, 32
  %v1522 = vpop.permute.xlu0 %1521
  %1525 = vrot.lane.b32.xlu0 %v1501, 48
  %v1526 = vpop.permute.xlu0 %1525
  %1527 = vrot.lane.b32.xlu0 %v1506, 48
  %v1528 = vpop.permute.xlu0 %1527
  %1531 = vrot.lane.b32.xlu0 %v1501, 64
  %v1532 = vpop.permute.xlu0 %1531
  %1533 = vrot.lane.b32.xlu0 %v1506, 64
  %v1534 = vpop.permute.xlu0 %1533
  %1537 = vrot.lane.b32.xlu0 %v1501, 80
  %v1538 = vpop.permute.xlu0 %1537
  %1539 = vrot.lane.b32.xlu0 %v1506, 80
  %v1540 = vpop.permute.xlu0 %1539
  %1543 = vrot.lane.b32.xlu0 %v1501, 96
  %v1544 = vpop.permute.xlu0 %1543
  %1545 = vrot.lane.b32.xlu0 %v1506, 96
  %v1546 = vpop.permute.xlu0 %1545
  %1549 = vrot.lane.b32.xlu0 %v1501, 112
  %v1550 = vpop.permute.xlu0 %1549
  %1551 = vrot.lane.b32.xlu0 %v1506, 112
  %v1552 = vpop.permute.xlu0 %1551
  %v1555 = vsel %vm290, %v1501, %v1514
  %v1556 = vsel %vm290, %v1506, %v1516
  %v1557 = vsel %vm293, %v1555, %v1520
  %v1558 = vsel %vm293, %v1556, %v1522
  %v1559 = vsel %vm296, %v1557, %v1526
  %v1560 = vsel %vm296, %v1558, %v1528
  %v1561 = vsel %vm299, %v1559, %v1532
  %v1562 = vsel %vm299, %v1560, %v1534
  %v1563 = vsel %vm302, %v1561, %v1538
  %v1564 = vsel %vm302, %v1562, %v1540
  %v1565 = vsel %vm305, %v1563, %v1544
  %v1566 = vsel %vm305, %v1564, %v1546
  %v1567 = vsel %vm308, %v1565, %v1550
  %v1568 = vsel %vm308, %v1566, %v1552
  %v1569 = vrot.slane %v1501, 1
  %v1570 = vrot.slane %v1506, 1
  %v1573 = vrot.slane %v1501, 2
  %v1574 = vrot.slane %v1506, 2
  %1575 = vrot.lane.b32.xlu0 %v1573, 16
  %v1576 = vpop.permute.xlu0 %1575
  %1577 = vrot.lane.b32.xlu0 %v1574, 16
  %v1578 = vpop.permute.xlu0 %1577
  %v1581 = vrot.slane %v1501, 3
  %v1582 = vrot.slane %v1506, 3
  %1583 = vrot.lane.b32.xlu0 %v1581, 32
  %v1584 = vpop.permute.xlu0 %1583
  %1585 = vrot.lane.b32.xlu0 %v1582, 32
  %v1586 = vpop.permute.xlu0 %1585
  %v1589 = vrot.slane %v1501, 4
  %v1590 = vrot.slane %v1506, 4
  %1591 = vrot.lane.b32.xlu0 %v1589, 48
  %v1592 = vpop.permute.xlu0 %1591
  %1593 = vrot.lane.b32.xlu0 %v1590, 48
  %v1594 = vpop.permute.xlu0 %1593
  %v1597 = vrot.slane %v1501, 5
  %v1598 = vrot.slane %v1506, 5
  %1599 = vrot.lane.b32.xlu0 %v1597, 64
  %v1600 = vpop.permute.xlu0 %1599
  %1601 = vrot.lane.b32.xlu0 %v1598, 64
  %v1602 = vpop.permute.xlu0 %1601
  %v1605 = vrot.slane %v1501, 6
  %v1606 = vrot.slane %v1506, 6
  %1607 = vrot.lane.b32.xlu0 %v1605, 80
  %v1608 = vpop.permute.xlu0 %1607
  %1609 = vrot.lane.b32.xlu0 %v1606, 80
  %v1610 = vpop.permute.xlu0 %1609
  %v1613 = vrot.slane %v1501, 7
  %v1614 = vrot.slane %v1506, 7
  %1615 = vrot.lane.b32.xlu0 %v1613, 96
  %v1616 = vpop.permute.xlu0 %1615
  %1617 = vrot.lane.b32.xlu0 %v1614, 96
  %v1618 = vpop.permute.xlu0 %1617
  %v1621 = vsel %vm290, %v1550, %v1569
  %v1622 = vsel %vm290, %v1552, %v1570
  %v1623 = vsel %vm293, %v1621, %v1576
  %v1624 = vsel %vm293, %v1622, %v1578
  %v1625 = vsel %vm296, %v1623, %v1584
  %v1626 = vsel %vm296, %v1624, %v1586
  %v1627 = vsel %vm299, %v1625, %v1592
  %v1628 = vsel %vm299, %v1626, %v1594
  %v1629 = vsel %vm302, %v1627, %v1600
  %v1630 = vsel %vm302, %v1628, %v1602
  %v1631 = vsel %vm305, %v1629, %v1608
  %v1632 = vsel %vm305, %v1630, %v1610
  %v1633 = vsel %vm308, %v1631, %v1616
  %v1634 = vsel %vm308, %v1632, %v1618
  %v1635 = vlaneseq
  %v1636 = vshrl.u32 %v1635, 7
  %v1637 = vsub.s32 0, %v1636
  %v1638 = vrot.slane %v1633, %v1637
  %v1639 = vlaneseq
  %v1640 = vshrl.u32 %v1639, 7
  %v1641 = vsub.s32 0, %v1640
  %v1642 = vrot.slane %v1634, %v1641
  %v1643 = vadd.f32 %v1567, %v1638
  %v1644 = vadd.f32 %v1568, %v1642
  %v1645 = vadd.f32 %v1643, %v309
  %v1646 = vadd.f32 %v1644, %v310
  %vm1647 = vcmp.gt.f32.partialorder %v1645, 0.0
  %vm1648 = vcmp.gt.f32.partialorder %v1646, 0.0
  %v1649 = vmin.f32 %v1645, 0.0
  %v1650 = vmin.f32 %v1646, 0.0
  %v1651 = vmul.f32 %v1649, 1.442695
  %v1652 = vpow.pop %v1651
  %v1653 = vmul.f32 %v1650, 1.442695
  %v1654 = vpow.pop %v1653
  %v1655 = vsub.f32 %v1652, 1.0
  %v1656 = vsub.f32 %v1654, 1.0
  %v1657 = vmul.f32 %v1655, 1.6732632
  %v1658 = vmul.f32 %v1656, 1.6732632
  %v1659 = vsel %vm1647, %v1645, %v1657
  %v1660 = vsel %vm1648, %v1646, %v1658
  %v1661 = vmul.f32 %v1659, 1.050701
  %v1662 = vmul.f32 %v1660, 1.050701
  %v1663 = vmul.f32 %v323, %v1661
  %v1664 = vmul.f32 %v324, %v1662
  %v1665 = vrot.slane %v1663, 4
  %v1666 = vadd.f32 %v1663, %v1665
  %v1667 = vrot.slane %v1666, 2
  %v1668 = vadd.f32 %v1666, %v1667
  %v1669 = vrot.slane %v1668, 1
  %v1670 = vadd.f32 %v1668, %v1669
  %v1671 = vrot.slane %v1664, 4
  %v1672 = vadd.f32 %v1664, %v1671
  %v1673 = vrot.slane %v1672, 2
  %v1674 = vadd.f32 %v1672, %v1673
  %v1675 = vrot.slane %v1674, 1
  %v1676 = vadd.f32 %v1674, %v1675
  %1679 = vrot.lane.b32.xlu0 %v1670, 112
  %v1680 = vpop.permute.xlu0 %1679
  %1681 = vrot.lane.b32.xlu0 %v1676, 112
  %v1682 = vpop.permute.xlu0 %1681
  %1685 = vrot.lane.b32.xlu0 %v1670, 96
  %v1686 = vpop.permute.xlu0 %1685
  %1687 = vrot.lane.b32.xlu0 %v1676, 96
  %v1688 = vpop.permute.xlu0 %1687
  %1691 = vrot.lane.b32.xlu0 %v1670, 80
  %v1692 = vpop.permute.xlu0 %1691
  %1693 = vrot.lane.b32.xlu0 %v1676, 80
  %v1694 = vpop.permute.xlu0 %1693
  %1697 = vrot.lane.b32.xlu0 %v1670, 64
  %v1698 = vpop.permute.xlu0 %1697
  %1699 = vrot.lane.b32.xlu0 %v1676, 64
  %v1700 = vpop.permute.xlu0 %1699
  %1703 = vrot.lane.b32.xlu0 %v1670, 48
  %v1704 = vpop.permute.xlu0 %1703
  %1705 = vrot.lane.b32.xlu0 %v1676, 48
  %v1706 = vpop.permute.xlu0 %1705
  %1709 = vrot.lane.b32.xlu0 %v1670, 32
  %v1710 = vpop.permute.xlu0 %1709
  %1711 = vrot.lane.b32.xlu0 %v1676, 32
  %v1712 = vpop.permute.xlu0 %1711
  %1715 = vrot.lane.b32.xlu0 %v1670, 16
  %v1716 = vpop.permute.xlu0 %1715
  %1717 = vrot.lane.b32.xlu0 %v1676, 16
  %v1718 = vpop.permute.xlu0 %1717
  %v1721 = vsel %vm384, %v1670, %v1680
  %v1722 = vsel %vm384, %v1676, %v1682
  %v1723 = vsel %vm387, %v1721, %v1686
  %v1724 = vsel %vm387, %v1722, %v1688
  %v1725 = vsel %vm390, %v1723, %v1692
  %v1726 = vsel %vm390, %v1724, %v1694
  %v1727 = vsel %vm393, %v1725, %v1698
  %v1728 = vsel %vm393, %v1726, %v1700
  %v1729 = vsel %vm396, %v1727, %v1704
  %v1730 = vsel %vm396, %v1728, %v1706
  %v1731 = vsel %vm399, %v1729, %v1710
  %v1732 = vsel %vm399, %v1730, %v1712
  %v1733 = vsel %vm402, %v1731, %v1716
  %v1734 = vsel %vm402, %v1732, %v1718
  %v1736 = vsel %vm290, %v1733, 0
  %v1739 = vsel %vm290, %v1734, 0
  %1741 = vmatprep.subr.mxu0 0.0
  %1742 = vmatpush1.msra.mxu0 0.0
  %1743 = vmatprep.subr.mxu0 0.0
  %1744 = vmatpush1.msra.mxu0 0.0
  %1745 = vmatprep.subr.mxu0 0.0
  %1746 = vmatpush1.msra.mxu0 0.0
  %1747 = vmatprep.subr.mxu0 0.0
  %1748 = vmatpush1.msra.mxu0 0.0
  %1749 = vmatprep.subr.mxu0 0.0
  %1750 = vmatpush1.msra.mxu0 0.0
  %1751 = vmatprep.subr.mxu0 0.0
  %1752 = vmatpush1.msra.mxu0 0.0
  %1753 = vmatprep.subr.mxu0 0.0
  %1754 = vmatpush1.msra.mxu0 0.0
  %1755 = vmatprep.subr.mxu0 0.0
  %1756 = vmatpush1.msra.mxu0 0.0
  %1757 = vmatprep.subr.mxu0 0.0
  %1758 = vmatpush1.msra.mxu0 0.0
  %1759 = vmatprep.subr.mxu0 0.0
  %1760 = vmatpush1.msra.mxu0 0.0
  %1761 = vmatprep.subr.mxu0 0.0
  %1762 = vmatpush1.msra.mxu0 0.0
  %1763 = vmatprep.subr.mxu0 0.0
  %1764 = vmatpush1.msra.mxu0 0.0
  %1765 = vmatprep.subr.mxu0 0.0
  %1766 = vmatpush1.msra.mxu0 0.0
  %1767 = vmatprep.subr.mxu0 0.0
  %1768 = vmatpush1.msra.mxu0 0.0
  %1769 = vmatprep.subr.mxu0 0.0
  %1770 = vmatpush1.msra.mxu0 %v46
  %1771 = vmatprep.subr.mxu0 0.0
  %1772 = vmatpush1.msra.mxu0 %v45
  %1773 = vmatprep.subr.mxu0 0.0
  %1774 = vmatpush2.msra.mxu0 0.0
  %1775 = vmatprep.subr.mxu0 0.0
  %1776 = vmatpush2.msra.mxu0 0.0
  %1777 = vmatprep.subr.mxu0 0.0
  %1778 = vmatpush2.msra.mxu0 0.0
  %1779 = vmatprep.subr.mxu0 0.0
  %1780 = vmatpush2.msra.mxu0 0.0
  %1781 = vmatprep.subr.mxu0 0.0
  %1782 = vmatpush2.msra.mxu0 0.0
  %1783 = vmatprep.subr.mxu0 0.0
  %1784 = vmatpush2.msra.mxu0 0.0
  %1785 = vmatprep.subr.mxu0 0.0
  %1786 = vmatpush2.msra.mxu0 0.0
  %1787 = vmatprep.subr.mxu0 0.0
  %1788 = vmatpush2.msra.mxu0 0.0
  %1789 = vmatprep.subr.mxu0 0.0
  %1790 = vmatpush2.msra.mxu0 0.0
  %1791 = vmatprep.subr.mxu0 0.0
  %1792 = vmatpush2.msra.mxu0 0.0
  %1793 = vmatprep.subr.mxu0 0.0
  %1794 = vmatpush2.msra.mxu0 0.0
  %1795 = vmatprep.subr.mxu0 0.0
  %1796 = vmatpush2.msra.mxu0 0.0
  %1797 = vmatprep.subr.mxu0 0.0
  %1798 = vmatpush2.msra.mxu0 0.0
  %1799 = vmatprep.subr.mxu0 0.0
  %1800 = vmatpush2.msra.mxu0 0.0
  %1801 = vmatprep.subr.mxu0 0.0
  %1802 = vmatpush2.msra.mxu0 0.0
  %1803 = vmatprep.subr.mxu0 0.0
  %1804 = vmatpush2.msra.mxu0 0.0
  %1805 = vmatprep.mubr.f32.mxu0 0.0
  %1806 = vmatmul.mubr.f32.gmra.mxu0 %v1736
  %v1807 = vpop.f32.mrf.mxu0
  %v1808 = vadd.f32 %v819, %v1807
  %v1809 = vpop.f32.mrf.mxu0
  %1810 = vmatprep.mubr.f32.mxu0 0.0
  %1811 = vmatmul.mubr.f32.gmra.mxu0 %v1739
  %v1812 = vpop.f32.mrf.mxu0
  %v1813 = vadd.f32 %v820, %v1812
  %v1814 = vpop.f32.mrf.mxu0
  %1815 = vdwg.mxu0
  %v1816 = vadd.f32 %v1808, %v905
  %v1817 = vadd.f32 %v1813, %v905
  %1820 = vrot.lane.b32.xlu0 %v1509, 96
  %v1821 = vpop.permute.xlu0 %1820
  %1822 = vrot.lane.b32.xlu0 %v1510, 96
  %v1823 = vpop.permute.xlu0 %1822
  %v1826 = vadd.f32 %v1816, %v1821
  %v1827 = vadd.f32 %v1817, %v1823
  %v1828 = vxor.u32 %v1826, 2147483648
  %v1829 = vxor.u32 %v1827, 2147483648
  %v1830 = vmul.f32 %v1828, 1.442695
  %v1831 = vpow.pop %v1830
  %v1832 = vmul.f32 %v1829, 1.442695
  %v1833 = vpow.pop %v1832
  %v1834 = vadd.f32 %v1831, 1.0
  %v1835 = vadd.f32 %v1833, 1.0
  %v1836 = vrcp.pop %v1834
  %v1837 = vmul.f32 1.0, %v1836
  %v1838 = vrcp.pop %v1835
  %v1839 = vmul.f32 1.0, %v1838
  %1840 = vrot.lane.b32.xlu0 %v1509, 64
  %v1841 = vpop.permute.xlu0 %1840
  %1842 = vrot.lane.b32.xlu0 %v1510, 64
  %v1843 = vpop.permute.xlu0 %1842
  %v1846 = vmul.f32 %v1837, %v1841
  %v1847 = vmul.f32 %v1839, %v1843
  %1850 = vrot.lane.b32.xlu0 %v1846, 32
  %v1851 = vpop.permute.xlu0 %1850
  %1852 = vrot.lane.b32.xlu0 %v1847, 32
  %v1853 = vpop.permute.xlu0 %1852
  %v1856 = vadd.f32 %v1816, %v1851
  %v1857 = vadd.f32 %v1817, %v1853
  %v1858 = vtanh.pop %v1856
  %v1859 = vtanh.pop %v1857
  %v1860 = vsub.f32 1.0, %v1837
  %v1861 = vsub.f32 1.0, %v1839
  %1864 = vrot.lane.b32.xlu0 %v1858, 112
  %v1865 = vpop.permute.xlu0 %1864
  %1866 = vrot.lane.b32.xlu0 %v1859, 112
  %v1867 = vpop.permute.xlu0 %1866
  %v1870 = vmul.f32 %v1860, %v1865
  %v1871 = vmul.f32 %v1861, %v1867
  %v1872 = vmul.f32 %v1837, %v1422
  %v1873 = vmul.f32 %v1839, %v1423
  %v1874 = vadd.f32 %v1870, %v1872
  %v1875 = vadd.f32 %v1871, %v1873
  %vm1876 = vcmask 261248
  %v1877 = vsel %vm1876, %v1874, 0.0
  %v1878 = vrot.slane %v1877, 4
  %v1879 = vadd.f32 %v1877, %v1878
  %v1880 = vrot.slane %v1879, 2
  %v1881 = vadd.f32 %v1879, %v1880
  %v1882 = vrot.slane %v1881, 1
  %v1883 = vadd.f32 %v1881, %v1882
  %v1884 = vsel %vm1876, %v1875, 0.0
  %v1885 = vrot.slane %v1884, 4
  %v1886 = vadd.f32 %v1884, %v1885
  %v1887 = vrot.slane %v1886, 2
  %v1888 = vadd.f32 %v1886, %v1887
  %v1889 = vrot.slane %v1888, 1
  %v1890 = vadd.f32 %v1888, %v1889
  %v1891 = vlaneseq
  %v1892 = vshrl.u32 %v1891, 7
  %v1893 = vsub.s32 3, %v1892
  %v1894 = vrot.slane %v53, %v1893
  %vm1897 = vcmask 1041409
  %v1898 = vsel %vm1897, %v1890, %v1883
  %1899 = vrot.lane.b32.xlu0 %v1898, 112
  %v1900 = vpop.permute.xlu0 %1899
  %v1901 = vsel %vm290, %v1900, 0
  %1903 = vmatprep.subr.mxu0 0.0
  %1904 = vmatpush1.msra.mxu0 0.0
  %1905 = vmatprep.subr.mxu0 0.0
  %1906 = vmatpush1.msra.mxu0 0.0
  %1907 = vmatprep.subr.mxu0 0.0
  %1908 = vmatpush1.msra.mxu0 0.0
  %1909 = vmatprep.subr.mxu0 0.0
  %1910 = vmatpush1.msra.mxu0 0.0
  %1911 = vmatprep.subr.mxu0 0.0
  %1912 = vmatpush1.msra.mxu0 0.0
  %1913 = vmatprep.subr.mxu0 0.0
  %1914 = vmatpush1.msra.mxu0 0.0
  %1915 = vmatprep.subr.mxu0 0.0
  %1916 = vmatpush1.msra.mxu0 0.0
  %1917 = vmatprep.subr.mxu0 0.0
  %1918 = vmatpush1.msra.mxu0 0.0
  %1919 = vmatprep.subr.mxu0 0.0
  %1920 = vmatpush1.msra.mxu0 0.0
  %1921 = vmatprep.subr.mxu0 0.0
  %1922 = vmatpush1.msra.mxu0 0.0
  %1923 = vmatprep.subr.mxu0 0.0
  %1924 = vmatpush1.msra.mxu0 0.0
  %1925 = vmatprep.subr.mxu0 0.0
  %1926 = vmatpush1.msra.mxu0 0.0
  %1927 = vmatprep.subr.mxu0 0.0
  %1928 = vmatpush1.msra.mxu0 0.0
  %1929 = vmatprep.subr.mxu0 0.0
  %1930 = vmatpush1.msra.mxu0 0.0
  %1931 = vmatprep.subr.mxu0 0.0
  %1932 = vmatpush1.msra.mxu0 %v48
  %1933 = vmatprep.subr.mxu0 0.0
  %1934 = vmatpush1.msra.mxu0 %v47
  %1935 = vmatprep.subr.mxu0 0.0
  %1936 = vmatpush2.msra.mxu0 0.0
  %1937 = vmatprep.subr.mxu0 0.0
  %1938 = vmatpush2.msra.mxu0 0.0
  %1939 = vmatprep.subr.mxu0 0.0
  %1940 = vmatpush2.msra.mxu0 0.0
  %1941 = vmatprep.subr.mxu0 0.0
  %1942 = vmatpush2.msra.mxu0 0.0
  %1943 = vmatprep.subr.mxu0 0.0
  %1944 = vmatpush2.msra.mxu0 0.0
  %1945 = vmatprep.subr.mxu0 0.0
  %1946 = vmatpush2.msra.mxu0 0.0
  %1947 = vmatprep.subr.mxu0 0.0
  %1948 = vmatpush2.msra.mxu0 0.0
  %1949 = vmatprep.subr.mxu0 0.0
  %1950 = vmatpush2.msra.mxu0 0.0
  %1951 = vmatprep.subr.mxu0 0.0
  %1952 = vmatpush2.msra.mxu0 0.0
  %1953 = vmatprep.subr.mxu0 0.0
  %1954 = vmatpush2.msra.mxu0 0.0
  %1955 = vmatprep.subr.mxu0 0.0
  %1956 = vmatpush2.msra.mxu0 0.0
  %1957 = vmatprep.subr.mxu0 0.0
  %1958 = vmatpush2.msra.mxu0 0.0
  %1959 = vmatprep.subr.mxu0 0.0
  %1960 = vmatpush2.msra.mxu0 0.0
  %1961 = vmatprep.subr.mxu0 0.0
  %1962 = vmatpush2.msra.mxu0 0.0
  %1963 = vmatprep.subr.mxu0 0.0
  %1964 = vmatpush2.msra.mxu0 0.0
  %1965 = vmatprep.subr.mxu0 0.0
  %1966 = vmatpush2.msra.mxu0 0.0
  %1967 = vmatprep.mubr.f32.mxu0 0.0
  %1968 = vmatmul.mubr.f32.gmra.mxu0 %v1901
  %v1969 = vpop.f32.mrf.mxu0
  %v1970 = vadd.f32 %v1894, %v1969
  %v1971 = vpop.f32.mrf.mxu0
  %1972 = vdwg.mxu0
  %vm1973 = vcmp.gt.f32.partialorder %v1970, 0.0
  %v1974 = vmin.f32 %v1970, 0.0
  %v1975 = vmul.f32 %v1974, 1.442695
  %v1976 = vpow.pop %v1975
  %v1977 = vsub.f32 %v1976, 1.0
  %v1978 = vmul.f32 %v1977, 1.6732632
  %v1979 = vsel %vm1973, %v1970, %v1978
  %v1980 = vmul.f32 %v1979, 1.050701
  %v1981 = vlaneseq
  %v1982 = vshrl.u32 %v1981, 7
  %v1983 = vsub.s32 4, %v1982
  %v1984 = vrot.slane %v53, %v1983
  %v1986 = vsel %vm290, %v1980, 0
  %1988 = vmatprep.subr.mxu0 0.0
  %1989 = vmatpush1.msra.mxu0 0.0
  %1990 = vmatprep.subr.mxu0 0.0
  %1991 = vmatpush1.msra.mxu0 0.0
  %1992 = vmatprep.subr.mxu0 0.0
  %1993 = vmatpush1.msra.mxu0 0.0
  %1994 = vmatprep.subr.mxu0 0.0
  %1995 = vmatpush1.msra.mxu0 0.0
  %1996 = vmatprep.subr.mxu0 0.0
  %1997 = vmatpush1.msra.mxu0 0.0
  %1998 = vmatprep.subr.mxu0 0.0
  %1999 = vmatpush1.msra.mxu0 0.0
  %2000 = vmatprep.subr.mxu0 0.0
  %2001 = vmatpush1.msra.mxu0 0.0
  %2002 = vmatprep.subr.mxu0 0.0
  %2003 = vmatpush1.msra.mxu0 0.0
  %2004 = vmatprep.subr.mxu0 0.0
  %2005 = vmatpush1.msra.mxu0 0.0
  %2006 = vmatprep.subr.mxu0 0.0
  %2007 = vmatpush1.msra.mxu0 0.0
  %2008 = vmatprep.subr.mxu0 0.0
  %2009 = vmatpush1.msra.mxu0 0.0
  %2010 = vmatprep.subr.mxu0 0.0
  %2011 = vmatpush1.msra.mxu0 0.0
  %2012 = vmatprep.subr.mxu0 0.0
  %2013 = vmatpush1.msra.mxu0 0.0
  %2014 = vmatprep.subr.mxu0 0.0
  %2015 = vmatpush1.msra.mxu0 0.0
  %2016 = vmatprep.subr.mxu0 0.0
  %2017 = vmatpush1.msra.mxu0 %v50
  %2018 = vmatprep.subr.mxu0 0.0
  %2019 = vmatpush1.msra.mxu0 %v49
  %2020 = vmatprep.subr.mxu0 0.0
  %2021 = vmatpush2.msra.mxu0 0.0
  %2022 = vmatprep.subr.mxu0 0.0
  %2023 = vmatpush2.msra.mxu0 0.0
  %2024 = vmatprep.subr.mxu0 0.0
  %2025 = vmatpush2.msra.mxu0 0.0
  %2026 = vmatprep.subr.mxu0 0.0
  %2027 = vmatpush2.msra.mxu0 0.0
  %2028 = vmatprep.subr.mxu0 0.0
  %2029 = vmatpush2.msra.mxu0 0.0
  %2030 = vmatprep.subr.mxu0 0.0
  %2031 = vmatpush2.msra.mxu0 0.0
  %2032 = vmatprep.subr.mxu0 0.0
  %2033 = vmatpush2.msra.mxu0 0.0
  %2034 = vmatprep.subr.mxu0 0.0
  %2035 = vmatpush2.msra.mxu0 0.0
  %2036 = vmatprep.subr.mxu0 0.0
  %2037 = vmatpush2.msra.mxu0 0.0
  %2038 = vmatprep.subr.mxu0 0.0
  %2039 = vmatpush2.msra.mxu0 0.0
  %2040 = vmatprep.subr.mxu0 0.0
  %2041 = vmatpush2.msra.mxu0 0.0
  %2042 = vmatprep.subr.mxu0 0.0
  %2043 = vmatpush2.msra.mxu0 0.0
  %2044 = vmatprep.subr.mxu0 0.0
  %2045 = vmatpush2.msra.mxu0 0.0
  %2046 = vmatprep.subr.mxu0 0.0
  %2047 = vmatpush2.msra.mxu0 0.0
  %2048 = vmatprep.subr.mxu0 0.0
  %2049 = vmatpush2.msra.mxu0 0.0
  %2050 = vmatprep.subr.mxu0 0.0
  %2051 = vmatpush2.msra.mxu0 0.0
  %2052 = vmatprep.mubr.f32.mxu0 0.0
  %2053 = vmatmul.mubr.f32.gmra.mxu0 %v1986
  %v2054 = vpop.f32.mrf.mxu0
  %v2055 = vadd.f32 %v1984, %v2054
  %v2056 = vpop.f32.mrf.mxu0
  %2057 = vdwg.mxu0
  %vm2058 = vcmp.gt.f32.partialorder %v2055, 0.0
  %v2059 = vmin.f32 %v2055, 0.0
  %v2060 = vmul.f32 %v2059, 1.442695
  %v2061 = vpow.pop %v2060
  %v2062 = vsub.f32 %v2061, 1.0
  %v2063 = vmul.f32 %v2062, 1.6732632
  %v2064 = vsel %vm2058, %v2055, %v2063
  %v2065 = vmul.f32 %v2064, 1.050701
  %v2067 = vlaneseq
  %v2068 = vshrl.u32 %v2067, 7
  %v2069 = vsub.s32 0, %v2068
  %v2070 = vrot.slane %v55, %v2069
  %v2073 = vsel %vm290, %v2065, 0
  %2075 = vmatprep.subr.mxu0 0.0
  %2076 = vmatpush1.msra.mxu0 0.0
  %2077 = vmatprep.subr.mxu0 0.0
  %2078 = vmatpush1.msra.mxu0 0.0
  %2079 = vmatprep.subr.mxu0 0.0
  %2080 = vmatpush1.msra.mxu0 0.0
  %2081 = vmatprep.subr.mxu0 0.0
  %2082 = vmatpush1.msra.mxu0 0.0
  %2083 = vmatprep.subr.mxu0 0.0
  %2084 = vmatpush1.msra.mxu0 0.0
  %2085 = vmatprep.subr.mxu0 0.0
  %2086 = vmatpush1.msra.mxu0 0.0
  %2087 = vmatprep.subr.mxu0 0.0
  %2088 = vmatpush1.msra.mxu0 0.0
  %2089 = vmatprep.subr.mxu0 0.0
  %2090 = vmatpush1.msra.mxu0 0.0
  %2091 = vmatprep.subr.mxu0 0.0
  %2092 = vmatpush1.msra.mxu0 0.0
  %2093 = vmatprep.subr.mxu0 0.0
  %2094 = vmatpush1.msra.mxu0 0.0
  %2095 = vmatprep.subr.mxu0 0.0
  %2096 = vmatpush1.msra.mxu0 0.0
  %2097 = vmatprep.subr.mxu0 0.0
  %2098 = vmatpush1.msra.mxu0 0.0
  %2099 = vmatprep.subr.mxu0 0.0
  %2100 = vmatpush1.msra.mxu0 0.0
  %2101 = vmatprep.subr.mxu0 0.0
  %2102 = vmatpush1.msra.mxu0 0.0
  %2103 = vmatprep.subr.mxu0 0.0
  %2104 = vmatpush1.msra.mxu0 %v52
  %2105 = vmatprep.subr.mxu0 0.0
  %2106 = vmatpush1.msra.mxu0 %v51
  %2107 = vmatprep.subr.mxu0 0.0
  %2108 = vmatpush2.msra.mxu0 0.0
  %2109 = vmatprep.subr.mxu0 0.0
  %2110 = vmatpush2.msra.mxu0 0.0
  %2111 = vmatprep.subr.mxu0 0.0
  %2112 = vmatpush2.msra.mxu0 0.0
  %2113 = vmatprep.subr.mxu0 0.0
  %2114 = vmatpush2.msra.mxu0 0.0
  %2115 = vmatprep.subr.mxu0 0.0
  %2116 = vmatpush2.msra.mxu0 0.0
  %2117 = vmatprep.subr.mxu0 0.0
  %2118 = vmatpush2.msra.mxu0 0.0
  %2119 = vmatprep.subr.mxu0 0.0
  %2120 = vmatpush2.msra.mxu0 0.0
  %2121 = vmatprep.subr.mxu0 0.0
  %2122 = vmatpush2.msra.mxu0 0.0
  %2123 = vmatprep.subr.mxu0 0.0
  %2124 = vmatpush2.msra.mxu0 0.0
  %2125 = vmatprep.subr.mxu0 0.0
  %2126 = vmatpush2.msra.mxu0 0.0
  %2127 = vmatprep.subr.mxu0 0.0
  %2128 = vmatpush2.msra.mxu0 0.0
  %2129 = vmatprep.subr.mxu0 0.0
  %2130 = vmatpush2.msra.mxu0 0.0
  %2131 = vmatprep.subr.mxu0 0.0
  %2132 = vmatpush2.msra.mxu0 0.0
  %2133 = vmatprep.subr.mxu0 0.0
  %2134 = vmatpush2.msra.mxu0 0.0
  %2135 = vmatprep.subr.mxu0 0.0
  %2136 = vmatpush2.msra.mxu0 0.0
  %2137 = vmatprep.subr.mxu0 0.0
  %2138 = vmatpush2.msra.mxu0 0.0
  %2139 = vmatprep.mubr.f32.mxu0 0.0
  %2140 = vmatmul.mubr.f32.gmra.mxu0 %v2073
  %v2141 = vpop.f32.mrf.mxu0
  %v2142 = vadd.f32 %v2070, %v2141
  %v2143 = vpop.f32.mrf.mxu0
  %2144 = vdwg.mxu0
  %vm2145 = vcmask 25600
  %2146 = vst.msk [vmem:[%s12] sm:$0x3] %vm2145, %v2142
  // Predicated region
  $region50: #{mpnn_forward.1} parent=0 // pred_check
    _
  $region51: #{mpnn_forward.1} parent=0 // pred_check_branch
    %2148 = sbr.rel (0) target = $region53
  $region52: #{mpnn_forward.1} parent=0 // pred_region
    _
  $region53: #{mpnn_forward.1} parent=0 // pred_fallthru
    _
  // Predicated region
  $region54: #{mpnn_forward.1} parent=0 // pred_check
    _
  $region55: #{mpnn_forward.1} parent=0 // pred_check_branch
    %2150 = sbr.rel (0) target = $region57
  $region56: #{mpnn_forward.1} parent=0 // pred_region
    _
  $region57: #{mpnn_forward.1} parent=0 // pred_fallthru
    _

</llo_original>
